<compile_context>
chip_gen: v7x
topology: tpu7x:2x2x1
jax: 0.10.0
libtpu: 0.0.40
codegen_flags: <defaults>
</compile_context>

<pallas_src>
import functools

import jax
import jax.numpy as jnp
from jax.experimental import pallas as pl
from jax.experimental.pallas import tpu as pltpu

HIDDEN = 64     # per-branch surrogate conv width; both branches side by side -> 128 lanes
FEAT = 2048     # per-backbone feature dim (resnet50 / inception_v3 both emit 2048)
KRAW = 27       # 3x3 patch * 3 channels
KAUG = 28       # + ones column carrying the folded normalization bias
KPAD = 32       # zero-padded contraction dim


# --------------------------- Fused Pallas kernel -----------------------------

def _fused_kernel(a_ref, w_ref, p_ref, o_ref, acc_ref, *, inv_count):
    """One grid step == one frame.

    a_ref  : (HW, KPAD)        bf16  raw 3x3 patches (+ ones col, + zero pad) of this frame
    w_ref  : (KPAD, 2*HIDDEN)  bf16  normalization-folded conv weights (+ bias row), both branches
    p_ref  : (2*HIDDEN, 2*FEAT) bf16 block-diagonal projection [resnet | inception]
    o_ref  : (1, 2*FEAT)       f32   final concatenated feature vector (written at last step)
    acc_ref: (1, 2*HIDDEN)     f32   VMEM accumulator: sum of ReLU'd conv over pixels & frames
    """
    n = pl.program_id(0)

    @pl.when(n == 0)
    def _init():
        acc_ref[...] = jnp.zeros_like(acc_ref)

    # Conv stem for BOTH backbones in one MXU pass (normalization + bias folded into w).
    conv = jnp.dot(a_ref[...], w_ref[...],
                   preferred_element_type=jnp.float32)               # (HW, 128) f32
    # ReLU + spatial GAP epilogue, accumulated across frames.
    acc_ref[...] += jnp.sum(jnp.maximum(conv, 0.0), axis=0, keepdims=True)   # (1, 128)

    @pl.when(n == pl.num_programs(0) - 1)
    def _finalize():
        pooled = (acc_ref[...] * inv_count).astype(jnp.bfloat16)     # mean over pixels & frames
        # Block-diagonal projection writes the concatenated (1, 4096) result directly.
        o_ref[...] = jnp.dot(pooled, p_ref[...],
                             preferred_element_type=jnp.float32)


def fused_forward(patches, conv_w, proj_w, n_frames, hw):
    out = pl.pallas_call(
        functools.partial(_fused_kernel, inv_count=1.0 / float(n_frames * hw)),
        out_shape=jax.ShapeDtypeStruct((1, 2 * FEAT), jnp.float32),
        grid=(n_frames,),
        in_specs=[
            pl.BlockSpec((hw, KPAD), lambda n: (n, 0)),               # per-frame patches
            pl.BlockSpec((KPAD, 2 * HIDDEN), lambda n: (0, 0)),       # constant block (fetched once)
            pl.BlockSpec((2 * HIDDEN, 2 * FEAT), lambda n: (0, 0)),   # constant block (fetched once)
        ],
        out_specs=pl.BlockSpec((1, 2 * FEAT), lambda n: (0, 0)),
        scratch_shapes=[pltpu.VMEM((1, 2 * HIDDEN), jnp.float32)],
        compiler_params=pltpu.CompilerParams(
            # The frame axis carries the accumulator / revisited output -> reduction axis.
            dimension_semantics=("arbitrary",)),
    )(patches, conv_w, proj_w)
    return out.reshape(2 * FEAT)


# --------------------------- Module wrapper ---------------------------------

class VisualFeatureExtractor:
    def __init__(self, key):
        k1, k2, k3, k4 = jax.random.split(key, 4)
        # Deterministic surrogate-backbone parameters (stand-ins for pretrained nets).
        w_res = 0.05 * jax.random.normal(k1, (KRAW, HIDDEN), jnp.float32)
        w_inc = 0.05 * jax.random.normal(k2, (KRAW, HIDDEN), jnp.float32)
        p_res = 0.05 * jax.random.normal(k3, (HIDDEN, FEAT), jnp.float32)
        p_inc = 0.05 * jax.random.normal(k4, (HIDDEN, FEAT), jnp.float32)

        mean = jnp.array([0.485, 0.456, 0.406], jnp.float32)
        std = jnp.array([0.229, 0.224, 0.225], jnp.float32)

        # Fold the per-channel affine preprocessing into the conv weights.
        #   resnet    : x_norm = x * (1/std)       + (-mean/std)   (no /255, mirrors torch code)
        #   inception : x_norm = x * (1/(255*std)) + (-mean/std)
        # Patch rows are ordered (dy, dx) major / channel minor -> per-channel factors tile 9x.
        scale_res = jnp.tile(1.0 / std, 9)[:, None]                    # (27, 1)
        scale_inc = jnp.tile(1.0 / (255.0 * std), 9)[:, None]
        offset = jnp.tile(-mean / std, 9)[:, None]                     # same shift for both branches

        w_res_fold = w_res * scale_res                                 # (27, HIDDEN)
        w_inc_fold = w_inc * scale_inc
        bias_res = jnp.sum(w_res * offset, axis=0)                     # (HIDDEN,)
        bias_inc = jnp.sum(w_inc * offset, axis=0)

        # Combined conv weight: both branches side by side (lane-dense, 128 wide), bias folded
        # into an extra row matched by the patches' ones column, contraction dim padded to 32.
        w_comb = jnp.concatenate([w_res_fold, w_inc_fold], axis=1)     # (27, 128)
        bias = jnp.concatenate([bias_res, bias_inc])[None, :]          # (1, 128)
        w_comb = jnp.concatenate(
            [w_comb, bias, jnp.zeros((KPAD - KAUG, 2 * HIDDEN), jnp.float32)], axis=0)
        self.conv_w = w_comb.astype(jnp.bfloat16)                      # (32, 128)

        # Block-diagonal projection: pooled[:, :64] -> resnet 2048-d, pooled[:, 64:] -> inception 2048-d.
        proj = jnp.zeros((2 * HIDDEN, 2 * FEAT), jnp.float32)
        proj = proj.at[:HIDDEN, :FEAT].set(p_res)
        proj = proj.at[HIDDEN:, FEAT:].set(p_inc)
        self.proj_w = proj.astype(jnp.bfloat16)                        # (128, 4096)

    @staticmethod
    def _im2col3x3(x):
        # SAME-padded 3x3 patches of RAW pixels (layout glue, ~frame-sized at this resolution).
        # Border positions see raw-zero padding (the folded bias treats them as raw value 0).
        # TODO(synk): at 224/299 resolution do this in-kernel as shifted accumulate-matmuls.
        N, H, W, C = x.shape
        xp = jnp.pad(x, ((0, 0), (1, 1), (1, 1), (0, 0)))
        cols = [xp[:, dy:dy + H, dx:dx + W, :] for dy in range(3) for dx in range(3)]
        patches = jnp.concatenate(cols, axis=-1).reshape(N * H * W, KRAW)   # (N*H*W, 27)
        ones = jnp.ones((N * H * W, 1), jnp.float32)                        # bias column
        zeros = jnp.zeros((N * H * W, KPAD - KAUG), jnp.float32)            # lane pad 28 -> 32
        return jnp.concatenate([patches, ones, zeros], axis=1).astype(jnp.bfloat16)

    def forward(self, frames):
        if frames.shape[0] == 0:
            return jnp.zeros((2 * FEAT,), jnp.float32)
        N, H, W, C = frames.shape
        patches = self._im2col3x3(frames.astype(jnp.float32))          # (N*H*W, 32) bf16
        return fused_forward(patches, self.conv_w, self.proj_w, N, H * W)


# ------------------------------- Main ----------------------------------------

if __name__ == "__main__":
    key = jax.random.PRNGKey(0)
    k_frames, k_params = jax.random.split(key)
    # 8 small "video frames", pixel values in [0, 255], 3 channels (NHWC).
    frames = jax.random.uniform(k_frames, (8, 16, 16, 3), jnp.float32, 0.0, 255.0)

    extractor = VisualFeatureExtractor(k_params)
    feats = extractor.forward(frames)
    feats = jax.block_until_ready(feats)

    assert feats.shape == (2 * FEAT,), feats.shape
    assert feats.dtype == jnp.float32, feats.dtype
    assert bool(jnp.all(jnp.isfinite(feats)))
    print("KERNEL_OK")
</pallas_src>

<mosaic_0001>
module attributes {stable_mosaic.version = 11 : i64} {
  func.func @_fused_kernel(%arg0: i32, %arg1: memref<256x32xbf16, #tpu.memory_space<vmem>>, %arg2: memref<32x128xbf16, #tpu.memory_space<vmem>>, %arg3: memref<128x4096xbf16, #tpu.memory_space<vmem>>, %arg4: memref<1x4096xf32, #tpu.memory_space<vmem>>, %arg5: memref<1x128xf32, #tpu.memory_space<vmem>>) attributes {dimension_semantics = [#tpu.dimension_semantics<arbitrary>], iteration_bounds = array<i64: 8>, scalar_prefetch = 0 : i64, scratch_operands = 1 : i64, tpu.core_type = #tpu.core_type<tc>, window_params = [{transform_indices = @transform_0, window_bounds = array<i64: 256, 32>}, {pipeline_mode = #tpu.pipeline_mode<synchronous>, transform_indices = @transform_1, window_bounds = array<i64: 32, 128>}, {pipeline_mode = #tpu.pipeline_mode<synchronous>, transform_indices = @transform_2, window_bounds = array<i64: 128, 4096>}, {pipeline_mode = #tpu.pipeline_mode<synchronous>, transform_indices = @transform_3, window_bounds = array<i64: 1, 4096>}]} {
    %c0_i32 = arith.constant 0 : i32
    %0 = arith.cmpi eq, %arg0, %c0_i32 : i32
    %1 = arith.extui %0 : i1 to i32
    %c0_i32_0 = arith.constant 0 : i32
    %2 = arith.cmpi ne, %1, %c0_i32_0 : i32
    scf.if %2 {
      %cst_11 = arith.constant 0.000000e+00 : f32
      %16 = vector.broadcast %cst_11 : f32 to vector<1x128xf32>
      %c0_12 = arith.constant 0 : index
      %c0_13 = arith.constant 0 : index
      %17 = vector.load %arg5[%c0_12, %c0_13] : memref<1x128xf32, #tpu.memory_space<vmem>>, vector<1x128xf32>
      tpu.vector_store %arg5[%c0_12, %c0_13], %16 {strides = array<i32>} : memref<1x128xf32, #tpu.memory_space<vmem>>, vector<1x128xf32>,
    } else {
    }
    %c0 = arith.constant 0 : index
    %c0_1 = arith.constant 0 : index
    %3 = vector.load %arg1[%c0, %c0_1] : memref<256x32xbf16, #tpu.memory_space<vmem>>, vector<256x32xbf16>
    %c0_2 = arith.constant 0 : index
    %c0_3 = arith.constant 0 : index
    %4 = vector.load %arg2[%c0_2, %c0_3] : memref<32x128xbf16, #tpu.memory_space<vmem>>, vector<32x128xbf16>
    %cst = arith.constant dense<0.000000e+00> : vector<256x128xf32>
    %5 = tpu.matmul %3, %4, %cst {dimension_numbers = #tpu.dot_dimension_numbers<[1], [0], [0], [1], [0, 0, 1, 1], [], []>} : vector<256x32xbf16>, vector<32x128xbf16>, vector<256x128xf32> -> vector<256x128xf32>
    %c0_4 = arith.constant 0 : index
    %c0_5 = arith.constant 0 : index
    %6 = vector.load %arg5[%c0_4, %c0_5] : memref<1x128xf32, #tpu.memory_space<vmem>>, vector<1x128xf32>
    %cst_6 = arith.constant 0.000000e+00 : f32
    %7 = vector.broadcast %cst_6 : f32 to vector<256x128xf32>
    %8 = arith.maximumf %5, %7 : vector<256x128xf32>
    %cst_7 = arith.constant dense<0.000000e+00> : vector<128xf32>
    %9 = vector.multi_reduction <add>, %8, %cst_7 [0] : vector<256x128xf32> to vector<128xf32>
    %10 = vector.shape_cast %9 : vector<128xf32> to vector<1x128xf32>
    %11 = arith.addf %6, %10 : vector<1x128xf32>
    %c0_8 = arith.constant 0 : index
    %c0_9 = arith.constant 0 : index
    %12 = vector.load %arg5[%c0_8, %c0_9] : memref<1x128xf32, #tpu.memory_space<vmem>>, vector<1x128xf32>
    tpu.vector_store %arg5[%c0_8, %c0_9], %11 {strides = array<i32>} : memref<1x128xf32, #tpu.memory_space<vmem>>, vector<1x128xf32>,
    %c7_i32 = arith.constant 7 : i32
    %13 = arith.cmpi eq, %arg0, %c7_i32 : i32
    %14 = arith.extui %13 : i1 to i32
    %c0_i32_10 = arith.constant 0 : i32
    %15 = arith.cmpi ne, %14, %c0_i32_10 : i32
    scf.if %15 {
      %c0_11 = arith.constant 0 : index
      %c0_12 = arith.constant 0 : index
      %16 = vector.load %arg5[%c0_11, %c0_12] : memref<1x128xf32, #tpu.memory_space<vmem>>, vector<1x128xf32>
      %cst_13 = arith.constant 4.8828125E-4 : f32
      %17 = vector.broadcast %cst_13 : f32 to vector<1x128xf32>
      %18 = arith.mulf %16, %17 : vector<1x128xf32>
      %19 = arith.truncf %18 : vector<1x128xf32> to vector<1x128xbf16>
      %c0_14 = arith.constant 0 : index
      %c0_15 = arith.constant 0 : index
      %20 = vector.load %arg3[%c0_14, %c0_15] : memref<128x4096xbf16, #tpu.memory_space<vmem>>, vector<128x4096xbf16>
      %cst_16 = arith.constant dense<0.000000e+00> : vector<1x4096xf32>
      %21 = tpu.matmul %19, %20, %cst_16 {dimension_numbers = #tpu.dot_dimension_numbers<[1], [0], [0], [1], [0, 0, 1, 1], [], []>} : vector<1x128xbf16>, vector<128x4096xbf16>, vector<1x4096xf32> -> vector<1x4096xf32>
      %c0_17 = arith.constant 0 : index
      %c0_18 = arith.constant 0 : index
      %22 = vector.load %arg4[%c0_17, %c0_18] : memref<1x4096xf32, #tpu.memory_space<vmem>>, vector<1x4096xf32>
      tpu.vector_store %arg4[%c0_17, %c0_18], %21 {strides = array<i32>} : memref<1x4096xf32, #tpu.memory_space<vmem>>, vector<1x4096xf32>,
    } else {
    }
    return
  }
  func.func @transform_0(%arg0: i32) -> (i32, i32) {
    %c0_i32 = arith.constant 0 : i32
    %c0_i32_0 = arith.constant 0 : i32
    return %arg0, %c0_i32 : i32, i32
  }
  func.func @transform_1(%arg0: i32) -> (i32, i32) {
    %c0_i32 = arith.constant 0 : i32
    %c0_i32_0 = arith.constant 0 : i32
    %c0_i32_1 = arith.constant 0 : i32
    return %c0_i32, %c0_i32_0 : i32, i32
  }
  func.func @transform_2(%arg0: i32) -> (i32, i32) {
    %c0_i32 = arith.constant 0 : i32
    %c0_i32_0 = arith.constant 0 : i32
    %c0_i32_1 = arith.constant 0 : i32
    return %c0_i32, %c0_i32_0 : i32, i32
  }
  func.func @transform_3(%arg0: i32) -> (i32, i32) {
    %c0_i32 = arith.constant 0 : i32
    %c0_i32_0 = arith.constant 0 : i32
    %c0_i32_1 = arith.constant 0 : i32
    return %c0_i32, %c0_i32_0 : i32, i32
  }
}

</mosaic_0001>

<llo_original>
// kernel: tpu_custom_call.1
$region0: #{tpu_custom_call.1}
  #allocation0 [shape = 'u32[]', space=smem, size = 0x4, offset = 0x4, fixed_abs, tag = 'smem constant byte address 0x4 - core index']
  #allocation1 [shape = 'u32[144,128]{1,0:T(1,128)}', space=vmem, size = 0x12000, scoped, tag = 'internal scratch']
  #allocation2 [shape = 'f32[1,128]{1,0:T(1,128)}', space=vmem, size = 0x200, scoped, tag = 'scratch operand']
  %s0 = inlined_call_operand.vmem [shape: bf16[2048,32], index: 0, kind: input, shape index: {}]
  %s1 = inlined_call_operand.vmem [shape: bf16[32,128], index: 1, kind: input, shape index: {}]
  %s2 = inlined_call_operand.hbm [shape: bf16[128,4096], index: 2, kind: input, shape index: {}]
  %s3 = inlined_call_operand.hbm [shape: f32[1,4096], index: 3, kind: output, shape index: {}]
  %s4 = sld [smem:[#allocation0]]
  $region57: #{tpu_custom_call.1} parent=0
    _
  %s6 = ssub.s32 1, %s4
  %s7 = scalar_select 0, %s6, %s4
  $region1: #{tpu_custom_call.1} parent=0
    #allocation3 [shape = 'u8[1048576]{0}', space=vmem, size = 0x100000, scoped, tag = 'input window, operand 2, single buffered']
    #allocation4 [shape = 's32[2]{0}', space=sflag, size = 0x8, scoped, tag = 'scoped memory for tpu_custom_call.1']
    #allocation5 [shape = 's32[2]{0}', space=sflag, size = 0x8, scoped, tag = 'scoped memory for tpu_custom_call.1']
    #allocation6 [shape = 'u8[16384]{0}', space=vmem, size = 0x4000, scoped, tag = 'output window, operand 0, single buffered']
    %8 = vsyncpa [#allocation4], 0
    %9 = vsyncpa [#allocation5], 0
    loop: start=0, step=1, limit=10
    $region2: #{tpu_custom_call.1} parent=1 // loop_pre_header
      _
    $region3: #{tpu_custom_call.1} parent=1 // loop_header
      %s11 = sphi 0, %s15
      %p12 = scmp.ge.s32.totalorder %s11, 10
      %s21 = sphi 0, %s23
      %s24 = sphi 0, %s21
      %s25 = sphi 0, %s24
      %s41 = sphi 0, %s25
      %s45 = sphi 0, %s45
      %s47 = sphi 0, %s45
      %s48 = sphi 0, %s47
      %s62 = sphi 0, %s48
      %s66 = sphi 0, %s66
      %s68 = sphi 0, %s66
      %s69 = sphi 0, %s68
      %s83 = sphi 0, %s69
      %s87 = sphi 0, %s87
      %s89 = sphi 0, %s87
      %s90 = sphi 0, %s89
      %s104 = sphi 0, %s90
    $region4: #{tpu_custom_call.1} parent=1 // loop_header_branch
      %14 = sbr.rel (%p12) target = $region8
    $region5: #{tpu_custom_call.1} parent=1 // loop_body
      %s16 = ssub.s32 %s11, 1
      %s17 = ssub.s32 %s11, 2
      %s18 = sadd.s32 %s11, 1
      %s19 = ssub.s32 %s11, %s18
      %p20 = scmp.eq.s32.totalorder %s19, 0
      %s22 = sadd.s32 %s21, 1
      %s23 = scalar_select %p20, %s21, %s22
      %p26 = pneg %p20
      %p27 = scmp.eq.s32.totalorder %s11, 7
      %p28 = por %p26, %p27
      %p29 = scmp.ne.s32.totalorder %s21, %s24
      %p30 = scmp.eq.s32.totalorder %s11, 0
      %p31 = por %p29, %p30
      %p32 = scmp.ne.s32.totalorder %s21, %s24
      %p33 = scmp.eq.s32.totalorder %s16, 7
      %p34 = por %p32, %p33
      %p35 = scmp.ne.s32.totalorder %s24, %s25
      %p36 = scmp.eq.s32.totalorder %s16, 0
      %p37 = por %p35, %p36
      %p38 = scmp.ne.s32.totalorder %s24, %s25
      %p39 = scmp.eq.s32.totalorder %s17, 7
      %p40 = por %p38, %p39
      %p42 = scmp.ne.s32.totalorder %s25, %s41
      %p43 = scmp.eq.s32.totalorder %s17, 0
      %p44 = por %p42, %p43
      %s46 = sadd.s32 %s45, 1
      %p49 = scmp.eq.s32.totalorder %s11, 7
      %p50 = scmp.ne.s32.totalorder %s45, %s47
      %p51 = scmp.eq.s32.totalorder %s11, 0
      %p52 = por %p50, %p51
      %p53 = scmp.ne.s32.totalorder %s45, %s47
      %p54 = scmp.eq.s32.totalorder %s16, 7
      %p55 = por %p53, %p54
      %p56 = scmp.ne.s32.totalorder %s47, %s48
      %p57 = scmp.eq.s32.totalorder %s16, 0
      %p58 = por %p56, %p57
      %p59 = scmp.ne.s32.totalorder %s47, %s48
      %p60 = scmp.eq.s32.totalorder %s17, 7
      %p61 = por %p59, %p60
      %p63 = scmp.ne.s32.totalorder %s48, %s62
      %p64 = scmp.eq.s32.totalorder %s17, 0
      %p65 = por %p63, %p64
      %s67 = sadd.s32 %s66, 1
      %p70 = scmp.eq.s32.totalorder %s11, 7
      %p71 = scmp.ne.s32.totalorder %s66, %s68
      %p72 = scmp.eq.s32.totalorder %s11, 0
      %p73 = por %p71, %p72
      %p74 = scmp.ne.s32.totalorder %s66, %s68
      %p75 = scmp.eq.s32.totalorder %s16, 7
      %p76 = por %p74, %p75
      %p77 = scmp.ne.s32.totalorder %s68, %s69
      %p78 = scmp.eq.s32.totalorder %s16, 0
      %p79 = por %p77, %p78
      %p80 = scmp.ne.s32.totalorder %s68, %s69
      %p81 = scmp.eq.s32.totalorder %s17, 7
      %p82 = por %p80, %p81
      %p84 = scmp.ne.s32.totalorder %s69, %s83
      %p85 = scmp.eq.s32.totalorder %s17, 0
      %p86 = por %p84, %p85
      %s88 = sadd.s32 %s87, 1
      %p91 = scmp.eq.s32.totalorder %s11, 7
      %p92 = scmp.ne.s32.totalorder %s87, %s89
      %p93 = scmp.eq.s32.totalorder %s11, 0
      %p94 = por %p92, %p93
      %p95 = scmp.ne.s32.totalorder %s87, %s89
      %p96 = scmp.eq.s32.totalorder %s16, 7
      %p97 = por %p95, %p96
      %p98 = scmp.ne.s32.totalorder %s89, %s90
      %p99 = scmp.eq.s32.totalorder %s16, 0
      %p100 = por %p98, %p99
      %p101 = scmp.ne.s32.totalorder %s89, %s90
      %p102 = scmp.eq.s32.totalorder %s17, 7
      %p103 = por %p101, %p102
      %p105 = scmp.ne.s32.totalorder %s90, %s104
      %p106 = scmp.eq.s32.totalorder %s17, 0
      %p107 = por %p105, %p106
      %p108 = scmp.le.s32.totalorder 1, %s11
      %p109 = scmp.lt.s32.totalorder %s11, 9
      %p110 = pnand %p108, %p109
      %p111 = pneg %p110
      // Predicated region
      $region9: #{tpu_custom_call.1} parent=5 // pred_check
        _
      $region10: #{tpu_custom_call.1} parent=5 // pred_check_branch
        %113 = sbr.rel (%p110) target = $region12
      $region11: #{tpu_custom_call.1} parent=5 // pred_region
        %s114 = ssub.s32 %s11, 1
        // Predicated region
        $region13: #{tpu_custom_call.1} parent=11 // pred_check
          %p115 = pneg %p58
        $region14: #{tpu_custom_call.1} parent=11 // pred_check_branch
          %117 = sbr.rel (%p115) target = $region16
        $region15: #{tpu_custom_call.1} parent=11 // pred_region
          _
        $region16: #{tpu_custom_call.1} parent=11 // pred_fallthru
          _
        // Predicated region
        $region17: #{tpu_custom_call.1} parent=11 // pred_check
          %p118 = pneg %p79
        $region18: #{tpu_custom_call.1} parent=11 // pred_check_branch
          %120 = sbr.rel (%p118) target = $region20
        $region19: #{tpu_custom_call.1} parent=11 // pred_region
          %s122 = ssub.s32 32768, 32768
          %123 = vsyncadd [#allocation4], %s122
          %s124 = sshll.u32 [#allocation3], 4
          %s125 = int_to_ptr.vmem [resolvable:$true] %s124
          %130 = dma.hbm_to_vmem [thread:$0]  %s2, 32768, %s125, [#allocation4], 2048, 2048, 128
        $region20: #{tpu_custom_call.1} parent=11 // pred_fallthru
          _
      $region12: #{tpu_custom_call.1} parent=5 // pred_fallthru
        _
      %p131 = scmp.lt.s32.totalorder %s11, 8
      // Predicated region
      $region21: #{tpu_custom_call.1} parent=5 // pred_check
        %p132 = pneg %p131
      $region22: #{tpu_custom_call.1} parent=5 // pred_check_branch
        %134 = sbr.rel (%p132) target = $region24
      $region23: #{tpu_custom_call.1} parent=5 // pred_region
        // Predicated region
        $region25: #{tpu_custom_call.1} parent=23 // pred_check
          %p135 = pneg %p31
        $region26: #{tpu_custom_call.1} parent=23 // pred_check_branch
          %137 = sbr.rel (%p135) target = $region28
        $region27: #{tpu_custom_call.1} parent=23 // pred_region
          %s138 = smul.u32 32, %s11
          %p139 = scmp.lt.s32.totalorder %s138, 255
          %s140 = scalar_select %p139, %s138, 255
          %s141 = smul.addr %s140, 4
          %s142 = scalar_lea.vmem %s0, %s141
          %s143 = smul.u32 32, %s11
        $region28: #{tpu_custom_call.1} parent=23 // pred_fallthru
          _
      $region24: #{tpu_custom_call.1} parent=5 // pred_fallthru
        _
      %p144 = scmp.le.s32.totalorder 1, %s11
      %p145 = scmp.lt.s32.totalorder %s11, 9
      %p146 = pnand %p144, %p145
      %p147 = pneg %p146
      // Predicated region
      $region29: #{tpu_custom_call.1} parent=5 // pred_check
        _
      $region30: #{tpu_custom_call.1} parent=5 // pred_check_branch
        %149 = sbr.rel (%p146) target = $region32
      $region31: #{tpu_custom_call.1} parent=5 // pred_region
        %s150 = ssub.s32 %s11, 1
        // Predicated region
        $region33: #{tpu_custom_call.1} parent=31 // pred_check
          %p151 = pneg %p79
        $region34: #{tpu_custom_call.1} parent=31 // pred_check_branch
          %153 = sbr.rel (%p151) target = $region36
        $region35: #{tpu_custom_call.1} parent=31 // pred_region
          %154 = dma.done [#allocation4], 32768
        $region36: #{tpu_custom_call.1} parent=31 // pred_fallthru
          _
        %s155 = smul.u32 32, %s16
        %p156 = scmp.lt.s32.totalorder %s155, 255
        %s157 = scalar_select %p156, %s155, 255
        %s158 = smul.addr %s157, 4
        %s159 = scalar_lea.vmem %s0, %s158
        %p160 = pneg %p37
        %p161 = pneg %p34
        %p162 = pneg %p58
        %p163 = pneg %p55
        %p164 = pneg %p79
        %p165 = pneg %p76
        %p166 = pneg %p100
        %p167 = pneg %p97
        %s168 = smul.u32 32, %s16
        %p169 = scmp.lt.s32.totalorder %s168, 255
        %s170 = scalar_select %p169, %s168, 255
        %s171 = smul.addr %s170, 4
        %s172 = scalar_lea.vmem %s0, %s171
        %s173 = smul.u32 32, %s16
        %p175 = scmp.eq.s32.totalorder %s16, 0
        // Predicated region
        $region37: #{tpu_custom_call.1} parent=31 // pred_check
          %p176 = pneg %p175
        $region38: #{tpu_custom_call.1} parent=31 // pred_check_branch
          %178 = sbr.rel (%p176) target = $region40
        $region39: #{tpu_custom_call.1} parent=31 // pred_region
          %179 = vst [vmem:[#allocation2] sm:$0x1] 0.0
        $region40: #{tpu_custom_call.1} parent=31 // pred_fallthru
          _
        %v180 = vld [vmem:[%s172] sm:$0xf]
        %v181 = vld [vmem:[%s172 + $0x4] sm:$0xf]
        %v182 = vld [vmem:[%s172 + $0x8] sm:$0xf]
        %v183 = vld [vmem:[%s172 + $0xc] sm:$0xf]
        %v184 = vld [vmem:[%s172 + $0x10] sm:$0xf]
        %v185 = vld [vmem:[%s172 + $0x14] sm:$0xf]
        %v186 = vld [vmem:[%s172 + $0x18] sm:$0xf]
        %v187 = vld [vmem:[%s172 + $0x1c] sm:$0xf]
        %v188 = vld [vmem:[%s172 + $0x20] sm:$0xf]
        %v189 = vld [vmem:[%s172 + $0x24] sm:$0xf]
        %v190 = vld [vmem:[%s172 + $0x28] sm:$0xf]
        %v191 = vld [vmem:[%s172 + $0x2c] sm:$0xf]
        %v192 = vld [vmem:[%s172 + $0x30] sm:$0xf]
        %v193 = vld [vmem:[%s172 + $0x34] sm:$0xf]
        %v194 = vld [vmem:[%s172 + $0x38] sm:$0xf]
        %v195 = vld [vmem:[%s172 + $0x3c] sm:$0xf]
        %v196 = vld [vmem:[%s172 + $0x40] sm:$0xf]
        %v197 = vld [vmem:[%s172 + $0x44] sm:$0xf]
        %v198 = vld [vmem:[%s172 + $0x48] sm:$0xf]
        %v199 = vld [vmem:[%s172 + $0x4c] sm:$0xf]
        %v200 = vld [vmem:[%s172 + $0x50] sm:$0xf]
        %v201 = vld [vmem:[%s172 + $0x54] sm:$0xf]
        %v202 = vld [vmem:[%s172 + $0x58] sm:$0xf]
        %v203 = vld [vmem:[%s172 + $0x5c] sm:$0xf]
        %v204 = vld [vmem:[%s172 + $0x60] sm:$0xf]
        %v205 = vld [vmem:[%s172 + $0x64] sm:$0xf]
        %v206 = vld [vmem:[%s172 + $0x68] sm:$0xf]
        %v207 = vld [vmem:[%s172 + $0x6c] sm:$0xf]
        %v208 = vld [vmem:[%s172 + $0x70] sm:$0xf]
        %v209 = vld [vmem:[%s172 + $0x74] sm:$0xf]
        %v210 = vld [vmem:[%s172 + $0x78] sm:$0xf]
        %v211 = vld [vmem:[%s172 + $0x7c] sm:$0xf]
        %v212 = vld [vmem:[%s1] sm:$0xf]
        %v213 = vld [vmem:[%s1 + $0x4] sm:$0xf]
        %v214 = vld [vmem:[%s1 + $0x8] sm:$0xf]
        %v215 = vld [vmem:[%s1 + $0xc] sm:$0xf]
        %v248 = vunpack.c.l.b16 %v180
        %v249 = vunpack.c.l.b16 %v181
        %v250 = vunpack.c.l.b16 %v182
        %v251 = vunpack.c.l.b16 %v183
        %v252 = vunpack.c.l.b16 %v184
        %v253 = vunpack.c.l.b16 %v185
        %v254 = vunpack.c.l.b16 %v186
        %v255 = vunpack.c.l.b16 %v187
        %v256 = vunpack.c.l.b16 %v188
        %v257 = vunpack.c.l.b16 %v189
        %v258 = vunpack.c.l.b16 %v190
        %v259 = vunpack.c.l.b16 %v191
        %v260 = vunpack.c.l.b16 %v192
        %v261 = vunpack.c.l.b16 %v193
        %v262 = vunpack.c.l.b16 %v194
        %v263 = vunpack.c.l.b16 %v195
        %v264 = vunpack.c.l.b16 %v196
        %v265 = vunpack.c.l.b16 %v197
        %v266 = vunpack.c.l.b16 %v198
        %v267 = vunpack.c.l.b16 %v199
        %v268 = vunpack.c.l.b16 %v200
        %v269 = vunpack.c.l.b16 %v201
        %v270 = vunpack.c.l.b16 %v202
        %v271 = vunpack.c.l.b16 %v203
        %v272 = vunpack.c.l.b16 %v204
        %v273 = vunpack.c.l.b16 %v205
        %v274 = vunpack.c.l.b16 %v206
        %v275 = vunpack.c.l.b16 %v207
        %v276 = vunpack.c.l.b16 %v208
        %v277 = vunpack.c.l.b16 %v209
        %v278 = vunpack.c.l.b16 %v210
        %v279 = vunpack.c.l.b16 %v211
        %v280 = vpack.c.b16 %v249, %v248
        %v281 = vpack.c.b16 %v251, %v250
        %v282 = vpack.c.b16 %v253, %v252
        %v283 = vpack.c.b16 %v255, %v254
        %v284 = vpack.c.b16 %v257, %v256
        %v285 = vpack.c.b16 %v259, %v258
        %v286 = vpack.c.b16 %v261, %v260
        %v287 = vpack.c.b16 %v263, %v262
        %v288 = vpack.c.b16 %v265, %v264
        %v289 = vpack.c.b16 %v267, %v266
        %v290 = vpack.c.b16 %v269, %v268
        %v291 = vpack.c.b16 %v271, %v270
        %v292 = vpack.c.b16 %v273, %v272
        %v293 = vpack.c.b16 %v275, %v274
        %v294 = vpack.c.b16 %v277, %v276
        %v295 = vpack.c.b16 %v279, %v278
        %v300 = vunpack.c.l.b16 %v212
        %v301 = vunpack.c.l.b16 %v213
        %v302 = vunpack.c.l.b16 %v214
        %v303 = vunpack.c.l.b16 %v215
        %v304 = vpack.c.b16 %v301, %v300
        %v305 = vpack.c.b16 %v303, %v302
        %vm308 = vcmask 261120
        %v310 = vsel %vm308, %v280, 0
        %v313 = vsel %vm308, %v281, 0
        %v316 = vsel %vm308, %v282, 0
        %v319 = vsel %vm308, %v283, 0
        %v322 = vsel %vm308, %v284, 0
        %v325 = vsel %vm308, %v285, 0
        %v328 = vsel %vm308, %v286, 0
        %v331 = vsel %vm308, %v287, 0
        %v334 = vsel %vm308, %v288, 0
        %v337 = vsel %vm308, %v289, 0
        %v340 = vsel %vm308, %v290, 0
        %v343 = vsel %vm308, %v291, 0
        %v346 = vsel %vm308, %v292, 0
        %v349 = vsel %vm308, %v293, 0
        %v352 = vsel %vm308, %v294, 0
        %v355 = vsel %vm308, %v295, 0
        %357 = vmatprep.subr.bf16.mxu0 0
        %358 = vmatpush1.bf16.msra.mxu0 %v304
        %359 = vmatprep.subr.bf16.mxu0 0
        %360 = vmatpush1.bf16.msra.mxu0 %v305
        %361 = vmatprep.subr.bf16.mxu0 0
        %362 = vmatpush1.bf16.msra.mxu0 0
        %363 = vmatprep.subr.bf16.mxu0 0
        %364 = vmatpush1.bf16.msra.mxu0 0
        %365 = vmatprep.subr.bf16.mxu0 0
        %366 = vmatpush1.bf16.msra.mxu0 0
        %367 = vmatprep.subr.bf16.mxu0 0
        %368 = vmatpush1.bf16.msra.mxu0 0
        %369 = vmatprep.subr.bf16.mxu0 0
        %370 = vmatpush1.bf16.msra.mxu0 0
        %371 = vmatprep.subr.bf16.mxu0 0
        %372 = vmatpush1.bf16.msra.mxu0 0
        %373 = vmatprep.subr.bf16.mxu0 0
        %374 = vmatpush1.bf16.msra.mxu0 0
        %375 = vmatprep.subr.bf16.mxu0 0
        %376 = vmatpush1.bf16.msra.mxu0 0
        %377 = vmatprep.subr.bf16.mxu0 0
        %378 = vmatpush1.bf16.msra.mxu0 0
        %379 = vmatprep.subr.bf16.mxu0 0
        %380 = vmatpush1.bf16.msra.mxu0 0
        %381 = vmatprep.subr.bf16.mxu0 0
        %382 = vmatpush1.bf16.msra.mxu0 0
        %383 = vmatprep.subr.bf16.mxu0 0
        %384 = vmatpush1.bf16.msra.mxu0 0
        %385 = vmatprep.subr.bf16.mxu0 0
        %386 = vmatpush1.bf16.msra.mxu0 0
        %387 = vmatprep.subr.bf16.mxu0 0
        %388 = vmatpush1.bf16.msra.mxu0 0
        %389 = vmatprep.mubr.bf16.mxu0 0
        %390 = vmatmul.mubr.bf16.gmra.mrb[0].mxu0 %v310
        %v391 = vpop.f32.mrb[0].mxu0
        %v392 = vadd.f32 0.0, %v391
        %v393 = vpop.f32.mrb[0].mxu0
        %v394 = vpop.f32.mrb[0].mxu0
        %v395 = vadd.f32 0.0, %v394
        %v396 = vpop.f32.mrb[0].mxu0
        %397 = vmatprep.mubr.bf16.mxu0 0
        %398 = vmatmul.mubr.bf16.gmra.mrb[0].mxu0 %v313
        %v399 = vpop.f32.mrb[0].mxu0
        %v400 = vadd.f32 0.0, %v399
        %v401 = vpop.f32.mrb[0].mxu0
        %v402 = vpop.f32.mrb[0].mxu0
        %v403 = vadd.f32 0.0, %v402
        %v404 = vpop.f32.mrb[0].mxu0
        %405 = vmatprep.mubr.bf16.mxu0 0
        %406 = vmatmul.mubr.bf16.gmra.mrb[0].mxu0 %v316
        %v407 = vpop.f32.mrb[0].mxu0
        %v408 = vadd.f32 0.0, %v407
        %v409 = vpop.f32.mrb[0].mxu0
        %v410 = vpop.f32.mrb[0].mxu0
        %v411 = vadd.f32 0.0, %v410
        %v412 = vpop.f32.mrb[0].mxu0
        %413 = vmatprep.mubr.bf16.mxu0 0
        %414 = vmatmul.mubr.bf16.gmra.mrb[0].mxu0 %v319
        %v415 = vpop.f32.mrb[0].mxu0
        %v416 = vadd.f32 0.0, %v415
        %v417 = vpop.f32.mrb[0].mxu0
        %v418 = vpop.f32.mrb[0].mxu0
        %v419 = vadd.f32 0.0, %v418
        %v420 = vpop.f32.mrb[0].mxu0
        %421 = vmatprep.mubr.bf16.mxu0 0
        %422 = vmatmul.mubr.bf16.gmra.mrb[0].mxu0 %v322
        %v423 = vpop.f32.mrb[0].mxu0
        %v424 = vadd.f32 0.0, %v423
        %v425 = vpop.f32.mrb[0].mxu0
        %v426 = vpop.f32.mrb[0].mxu0
        %v427 = vadd.f32 0.0, %v426
        %v428 = vpop.f32.mrb[0].mxu0
        %429 = vmatprep.mubr.bf16.mxu0 0
        %430 = vmatmul.mubr.bf16.gmra.mrb[0].mxu0 %v325
        %v431 = vpop.f32.mrb[0].mxu0
        %v432 = vadd.f32 0.0, %v431
        %v433 = vpop.f32.mrb[0].mxu0
        %v434 = vpop.f32.mrb[0].mxu0
        %v435 = vadd.f32 0.0, %v434
        %v436 = vpop.f32.mrb[0].mxu0
        %437 = vmatprep.mubr.bf16.mxu0 0
        %438 = vmatmul.mubr.bf16.gmra.mrb[0].mxu0 %v328
        %v439 = vpop.f32.mrb[0].mxu0
        %v440 = vadd.f32 0.0, %v439
        %v441 = vpop.f32.mrb[0].mxu0
        %v442 = vpop.f32.mrb[0].mxu0
        %v443 = vadd.f32 0.0, %v442
        %v444 = vpop.f32.mrb[0].mxu0
        %445 = vmatprep.mubr.bf16.mxu0 0
        %446 = vmatmul.mubr.bf16.gmra.mrb[0].mxu0 %v331
        %v447 = vpop.f32.mrb[0].mxu0
        %v448 = vadd.f32 0.0, %v447
        %v449 = vpop.f32.mrb[0].mxu0
        %v450 = vpop.f32.mrb[0].mxu0
        %v451 = vadd.f32 0.0, %v450
        %v452 = vpop.f32.mrb[0].mxu0
        %453 = vmatprep.mubr.bf16.mxu0 0
        %454 = vmatmul.mubr.bf16.gmra.mrb[0].mxu0 %v334
        %v455 = vpop.f32.mrb[0].mxu0
        %v456 = vadd.f32 0.0, %v455
        %v457 = vpop.f32.mrb[0].mxu0
        %v458 = vpop.f32.mrb[0].mxu0
        %v459 = vadd.f32 0.0, %v458
        %v460 = vpop.f32.mrb[0].mxu0
        %461 = vmatprep.mubr.bf16.mxu0 0
        %462 = vmatmul.mubr.bf16.gmra.mrb[0].mxu0 %v337
        %v463 = vpop.f32.mrb[0].mxu0
        %v464 = vadd.f32 0.0, %v463
        %v465 = vpop.f32.mrb[0].mxu0
        %v466 = vpop.f32.mrb[0].mxu0
        %v467 = vadd.f32 0.0, %v466
        %v468 = vpop.f32.mrb[0].mxu0
        %469 = vmatprep.mubr.bf16.mxu0 0
        %470 = vmatmul.mubr.bf16.gmra.mrb[0].mxu0 %v340
        %v471 = vpop.f32.mrb[0].mxu0
        %v472 = vadd.f32 0.0, %v471
        %v473 = vpop.f32.mrb[0].mxu0
        %v474 = vpop.f32.mrb[0].mxu0
        %v475 = vadd.f32 0.0, %v474
        %v476 = vpop.f32.mrb[0].mxu0
        %477 = vmatprep.mubr.bf16.mxu0 0
        %478 = vmatmul.mubr.bf16.gmra.mrb[0].mxu0 %v343
        %v479 = vpop.f32.mrb[0].mxu0
        %v480 = vadd.f32 0.0, %v479
        %v481 = vpop.f32.mrb[0].mxu0
        %v482 = vpop.f32.mrb[0].mxu0
        %v483 = vadd.f32 0.0, %v482
        %v484 = vpop.f32.mrb[0].mxu0
        %485 = vmatprep.mubr.bf16.mxu0 0
        %486 = vmatmul.mubr.bf16.gmra.mrb[0].mxu0 %v346
        %v487 = vpop.f32.mrb[0].mxu0
        %v488 = vadd.f32 0.0, %v487
        %v489 = vpop.f32.mrb[0].mxu0
        %v490 = vpop.f32.mrb[0].mxu0
        %v491 = vadd.f32 0.0, %v490
        %v492 = vpop.f32.mrb[0].mxu0
        %493 = vmatprep.mubr.bf16.mxu0 0
        %494 = vmatmul.mubr.bf16.gmra.mrb[0].mxu0 %v349
        %v495 = vpop.f32.mrb[0].mxu0
        %v496 = vadd.f32 0.0, %v495
        %v497 = vpop.f32.mrb[0].mxu0
        %v498 = vpop.f32.mrb[0].mxu0
        %v499 = vadd.f32 0.0, %v498
        %v500 = vpop.f32.mrb[0].mxu0
        %501 = vmatprep.mubr.bf16.mxu0 0
        %502 = vmatmul.mubr.bf16.gmra.mrb[0].mxu0 %v352
        %v503 = vpop.f32.mrb[0].mxu0
        %v504 = vadd.f32 0.0, %v503
        %v505 = vpop.f32.mrb[0].mxu0
        %v506 = vpop.f32.mrb[0].mxu0
        %v507 = vadd.f32 0.0, %v506
        %v508 = vpop.f32.mrb[0].mxu0
        %509 = vmatprep.mubr.bf16.mxu0 0
        %510 = vmatmul.mubr.bf16.gmra.mrb[0].mxu0 %v355
        %v511 = vpop.f32.mrb[0].mxu0
        %v512 = vadd.f32 0.0, %v511
        %v513 = vpop.f32.mrb[0].mxu0
        %v514 = vpop.f32.mrb[0].mxu0
        %v515 = vadd.f32 0.0, %v514
        %v516 = vpop.f32.mrb[0].mxu0
        %517 = vdwg.mxu0
        %v518 = vld [vmem:[#allocation2] sm:$0x1]
        %v519 = vmax.f32 %v392, 0.0
        %v520 = vmax.f32 %v395, 0.0
        %v521 = vmax.f32 %v400, 0.0
        %v522 = vmax.f32 %v403, 0.0
        %v523 = vmax.f32 %v408, 0.0
        %v524 = vmax.f32 %v411, 0.0
        %v525 = vmax.f32 %v416, 0.0
        %v526 = vmax.f32 %v419, 0.0
        %v527 = vmax.f32 %v424, 0.0
        %v528 = vmax.f32 %v427, 0.0
        %v529 = vmax.f32 %v432, 0.0
        %v530 = vmax.f32 %v435, 0.0
        %v531 = vmax.f32 %v440, 0.0
        %v532 = vmax.f32 %v443, 0.0
        %v533 = vmax.f32 %v448, 0.0
        %v534 = vmax.f32 %v451, 0.0
        %v535 = vmax.f32 %v456, 0.0
        %v536 = vmax.f32 %v459, 0.0
        %v537 = vmax.f32 %v464, 0.0
        %v538 = vmax.f32 %v467, 0.0
        %v539 = vmax.f32 %v472, 0.0
        %v540 = vmax.f32 %v475, 0.0
        %v541 = vmax.f32 %v480, 0.0
        %v542 = vmax.f32 %v483, 0.0
        %v543 = vmax.f32 %v488, 0.0
        %v544 = vmax.f32 %v491, 0.0
        %v545 = vmax.f32 %v496, 0.0
        %v546 = vmax.f32 %v499, 0.0
        %v547 = vmax.f32 %v504, 0.0
        %v548 = vmax.f32 %v507, 0.0
        %v549 = vmax.f32 %v512, 0.0
        %v550 = vmax.f32 %v515, 0.0
        %v551 = vadd.f32 %v519, %v520
        %v552 = vadd.f32 %v551, %v521
        %v553 = vadd.f32 %v552, %v522
        %v554 = vadd.f32 %v553, %v523
        %v555 = vadd.f32 %v554, %v524
        %v556 = vadd.f32 %v555, %v525
        %v557 = vadd.f32 %v556, %v526
        %v558 = vadd.f32 %v557, %v527
        %v559 = vadd.f32 %v558, %v528
        %v560 = vadd.f32 %v559, %v529
        %v561 = vadd.f32 %v560, %v530
        %v562 = vadd.f32 %v561, %v531
        %v563 = vadd.f32 %v562, %v532
        %v564 = vadd.f32 %v563, %v533
        %v565 = vadd.f32 %v564, %v534
        %v566 = vadd.f32 %v565, %v535
        %v567 = vadd.f32 %v566, %v536
        %v568 = vadd.f32 %v567, %v537
        %v569 = vadd.f32 %v568, %v538
        %v570 = vadd.f32 %v569, %v539
        %v571 = vadd.f32 %v570, %v540
        %v572 = vadd.f32 %v571, %v541
        %v573 = vadd.f32 %v572, %v542
        %v574 = vadd.f32 %v573, %v543
        %v575 = vadd.f32 %v574, %v544
        %v576 = vadd.f32 %v575, %v545
        %v577 = vadd.f32 %v576, %v546
        %v578 = vadd.f32 %v577, %v547
        %v579 = vadd.f32 %v578, %v548
        %v580 = vadd.f32 %v579, %v549
        %v581 = vadd.f32 %v580, %v550
        %v582 = vrot.slane %v581, 4
        %v583 = vadd.f32 %v581, %v582
        %v584 = vrot.slane %v583, 2
        %v585 = vadd.f32 %v583, %v584
        %v586 = vrot.slane %v585, 1
        %v587 = vadd.f32 %v585, %v586
        %v588 = vadd.f32 %v518, %v587
        %589 = vst [vmem:[#allocation2] sm:$0x1] %v588
        %p590 = scmp.eq.s32.totalorder %s16, 7
        // Predicated region
        $region41: #{tpu_custom_call.1} parent=31 // pred_check
          %p591 = pneg %p590
        $region42: #{tpu_custom_call.1} parent=31 // pred_check_branch
          %593 = sbr.rel (%p591) target = $region44
        $region43: #{tpu_custom_call.1} parent=31 // pred_region
          %v594 = vld [vmem:[#allocation2] sm:$0x1]
          %v595 = vmul.f32 %v594, 0.00048828125
          %v596 = vpack.c.bf16 %v595, %v595
          %v597 = vld [vmem:[#allocation3] sm:$0xff]
          %v598 = vld [vmem:[#allocation3 + $0x8] sm:$0xff]
          %v599 = vld [vmem:[#allocation3 + $0x10] sm:$0xff]
          %v600 = vld [vmem:[#allocation3 + $0x18] sm:$0xff]
          %v601 = vld [vmem:[#allocation3 + $0x20] sm:$0xff]
          %v602 = vld [vmem:[#allocation3 + $0x28] sm:$0xff]
          %v603 = vld [vmem:[#allocation3 + $0x30] sm:$0xff]
          %v604 = vld [vmem:[#allocation3 + $0x38] sm:$0xff]
          %v605 = vld [vmem:[#allocation3 + $0x40] sm:$0xff]
          %v606 = vld [vmem:[#allocation3 + $0x48] sm:$0xff]
          %v607 = vld [vmem:[#allocation3 + $0x50] sm:$0xff]
          %v608 = vld [vmem:[#allocation3 + $0x58] sm:$0xff]
          %v609 = vld [vmem:[#allocation3 + $0x60] sm:$0xff]
          %v610 = vld [vmem:[#allocation3 + $0x68] sm:$0xff]
          %v611 = vld [vmem:[#allocation3 + $0x70] sm:$0xff]
          %v612 = vld [vmem:[#allocation3 + $0x78] sm:$0xff]
          %v613 = vld [vmem:[#allocation3 + $0x80] sm:$0xff]
          %v614 = vld [vmem:[#allocation3 + $0x88] sm:$0xff]
          %v615 = vld [vmem:[#allocation3 + $0x90] sm:$0xff]
          %v616 = vld [vmem:[#allocation3 + $0x98] sm:$0xff]
          %v617 = vld [vmem:[#allocation3 + $0xa0] sm:$0xff]
          %v618 = vld [vmem:[#allocation3 + $0xa8] sm:$0xff]
          %v619 = vld [vmem:[#allocation3 + $0xb0] sm:$0xff]
          %v620 = vld [vmem:[#allocation3 + $0xb8] sm:$0xff]
          %v621 = vld [vmem:[#allocation3 + $0xc0] sm:$0xff]
          %v622 = vld [vmem:[#allocation3 + $0xc8] sm:$0xff]
          %v623 = vld [vmem:[#allocation3 + $0xd0] sm:$0xff]
          %v624 = vld [vmem:[#allocation3 + $0xd8] sm:$0xff]
          %v625 = vld [vmem:[#allocation3 + $0xe0] sm:$0xff]
          %v626 = vld [vmem:[#allocation3 + $0xe8] sm:$0xff]
          %v627 = vld [vmem:[#allocation3 + $0xf0] sm:$0xff]
          %v628 = vld [vmem:[#allocation3 + $0xf8] sm:$0xff]
          %v629 = vld [vmem:[#allocation3 + $0x100] sm:$0xff]
          %v630 = vld [vmem:[#allocation3 + $0x108] sm:$0xff]
          %v631 = vld [vmem:[#allocation3 + $0x110] sm:$0xff]
          %v632 = vld [vmem:[#allocation3 + $0x118] sm:$0xff]
          %v633 = vld [vmem:[#allocation3 + $0x120] sm:$0xff]
          %v634 = vld [vmem:[#allocation3 + $0x128] sm:$0xff]
          %v635 = vld [vmem:[#allocation3 + $0x130] sm:$0xff]
          %v636 = vld [vmem:[#allocation3 + $0x138] sm:$0xff]
          %v637 = vld [vmem:[#allocation3 + $0x140] sm:$0xff]
          %v638 = vld [vmem:[#allocation3 + $0x148] sm:$0xff]
          %v639 = vld [vmem:[#allocation3 + $0x150] sm:$0xff]
          %v640 = vld [vmem:[#allocation3 + $0x158] sm:$0xff]
          %v641 = vld [vmem:[#allocation3 + $0x160] sm:$0xff]
          %v642 = vld [vmem:[#allocation3 + $0x168] sm:$0xff]
          %v643 = vld [vmem:[#allocation3 + $0x170] sm:$0xff]
          %v644 = vld [vmem:[#allocation3 + $0x178] sm:$0xff]
          %v645 = vld [vmem:[#allocation3 + $0x180] sm:$0xff]
          %v646 = vld [vmem:[#allocation3 + $0x188] sm:$0xff]
          %v647 = vld [vmem:[#allocation3 + $0x190] sm:$0xff]
          %v648 = vld [vmem:[#allocation3 + $0x198] sm:$0xff]
          %v649 = vld [vmem:[#allocation3 + $0x1a0] sm:$0xff]
          %v650 = vld [vmem:[#allocation3 + $0x1a8] sm:$0xff]
          %v651 = vld [vmem:[#allocation3 + $0x1b0] sm:$0xff]
          %v652 = vld [vmem:[#allocation3 + $0x1b8] sm:$0xff]
          %v653 = vld [vmem:[#allocation3 + $0x1c0] sm:$0xff]
          %v654 = vld [vmem:[#allocation3 + $0x1c8] sm:$0xff]
          %v655 = vld [vmem:[#allocation3 + $0x1d0] sm:$0xff]
          %v656 = vld [vmem:[#allocation3 + $0x1d8] sm:$0xff]
          %v657 = vld [vmem:[#allocation3 + $0x1e0] sm:$0xff]
          %v658 = vld [vmem:[#allocation3 + $0x1e8] sm:$0xff]
          %v659 = vld [vmem:[#allocation3 + $0x1f0] sm:$0xff]
          %v660 = vld [vmem:[#allocation3 + $0x1f8] sm:$0xff]
          %v661 = vld [vmem:[#allocation3 + $0x200] sm:$0xff]
          %v662 = vld [vmem:[#allocation3 + $0x208] sm:$0xff]
          %v663 = vld [vmem:[#allocation3 + $0x210] sm:$0xff]
          %v664 = vld [vmem:[#allocation3 + $0x218] sm:$0xff]
          %v665 = vld [vmem:[#allocation3 + $0x220] sm:$0xff]
          %v666 = vld [vmem:[#allocation3 + $0x228] sm:$0xff]
          %v667 = vld [vmem:[#allocation3 + $0x230] sm:$0xff]
          %v668 = vld [vmem:[#allocation3 + $0x238] sm:$0xff]
          %v669 = vld [vmem:[#allocation3 + $0x240] sm:$0xff]
          %v670 = vld [vmem:[#allocation3 + $0x248] sm:$0xff]
          %v671 = vld [vmem:[#allocation3 + $0x250] sm:$0xff]
          %v672 = vld [vmem:[#allocation3 + $0x258] sm:$0xff]
          %v673 = vld [vmem:[#allocation3 + $0x260] sm:$0xff]
          %v674 = vld [vmem:[#allocation3 + $0x268] sm:$0xff]
          %v675 = vld [vmem:[#allocation3 + $0x270] sm:$0xff]
          %v676 = vld [vmem:[#allocation3 + $0x278] sm:$0xff]
          %v677 = vld [vmem:[#allocation3 + $0x280] sm:$0xff]
          %v678 = vld [vmem:[#allocation3 + $0x288] sm:$0xff]
          %v679 = vld [vmem:[#allocation3 + $0x290] sm:$0xff]
          %v680 = vld [vmem:[#allocation3 + $0x298] sm:$0xff]
          %v681 = vld [vmem:[#allocation3 + $0x2a0] sm:$0xff]
          %v682 = vld [vmem:[#allocation3 + $0x2a8] sm:$0xff]
          %v683 = vld [vmem:[#allocation3 + $0x2b0] sm:$0xff]
          %v684 = vld [vmem:[#allocation3 + $0x2b8] sm:$0xff]
          %v685 = vld [vmem:[#allocation3 + $0x2c0] sm:$0xff]
          %v686 = vld [vmem:[#allocation3 + $0x2c8] sm:$0xff]
          %v687 = vld [vmem:[#allocation3 + $0x2d0] sm:$0xff]
          %v688 = vld [vmem:[#allocation3 + $0x2d8] sm:$0xff]
          %v689 = vld [vmem:[#allocation3 + $0x2e0] sm:$0xff]
          %v690 = vld [vmem:[#allocation3 + $0x2e8] sm:$0xff]
          %v691 = vld [vmem:[#allocation3 + $0x2f0] sm:$0xff]
          %v692 = vld [vmem:[#allocation3 + $0x2f8] sm:$0xff]
          %v693 = vld [vmem:[#allocation3 + $0x300] sm:$0xff]
          %v694 = vld [vmem:[#allocation3 + $0x308] sm:$0xff]
          %v695 = vld [vmem:[#allocation3 + $0x310] sm:$0xff]
          %v696 = vld [vmem:[#allocation3 + $0x318] sm:$0xff]
          %v697 = vld [vmem:[#allocation3 + $0x320] sm:$0xff]
          %v698 = vld [vmem:[#allocation3 + $0x328] sm:$0xff]
          %v699 = vld [vmem:[#allocation3 + $0x330] sm:$0xff]
          %v700 = vld [vmem:[#allocation3 + $0x338] sm:$0xff]
          %v701 = vld [vmem:[#allocation3 + $0x340] sm:$0xff]
          %v702 = vld [vmem:[#allocation3 + $0x348] sm:$0xff]
          %v703 = vld [vmem:[#allocation3 + $0x350] sm:$0xff]
          %v704 = vld [vmem:[#allocation3 + $0x358] sm:$0xff]
          %v705 = vld [vmem:[#allocation3 + $0x360] sm:$0xff]
          %v706 = vld [vmem:[#allocation3 + $0x368] sm:$0xff]
          %v707 = vld [vmem:[#allocation3 + $0x370] sm:$0xff]
          %v708 = vld [vmem:[#allocation3 + $0x378] sm:$0xff]
          %v709 = vld [vmem:[#allocation3 + $0x380] sm:$0xff]
          %v710 = vld [vmem:[#allocation3 + $0x388] sm:$0xff]
          %v711 = vld [vmem:[#allocation3 + $0x390] sm:$0xff]
          %v712 = vld [vmem:[#allocation3 + $0x398] sm:$0xff]
          %v713 = vld [vmem:[#allocation3 + $0x3a0] sm:$0xff]
          %v714 = vld [vmem:[#allocation3 + $0x3a8] sm:$0xff]
          %v715 = vld [vmem:[#allocation3 + $0x3b0] sm:$0xff]
          %v716 = vld [vmem:[#allocation3 + $0x3b8] sm:$0xff]
          %v717 = vld [vmem:[#allocation3 + $0x3c0] sm:$0xff]
          %v718 = vld [vmem:[#allocation3 + $0x3c8] sm:$0xff]
          %v719 = vld [vmem:[#allocation3 + $0x3d0] sm:$0xff]
          %v720 = vld [vmem:[#allocation3 + $0x3d8] sm:$0xff]
          %v721 = vld [vmem:[#allocation3 + $0x3e0] sm:$0xff]
          %v722 = vld [vmem:[#allocation3 + $0x3e8] sm:$0xff]
          %v723 = vld [vmem:[#allocation3 + $0x3f0] sm:$0xff]
          %v724 = vld [vmem:[#allocation3 + $0x3f8] sm:$0xff]
          %v725 = vld [vmem:[#allocation3 + $0x400] sm:$0xff]
          %v726 = vld [vmem:[#allocation3 + $0x408] sm:$0xff]
          %v727 = vld [vmem:[#allocation3 + $0x410] sm:$0xff]
          %v728 = vld [vmem:[#allocation3 + $0x418] sm:$0xff]
          %v729 = vld [vmem:[#allocation3 + $0x420] sm:$0xff]
          %v730 = vld [vmem:[#allocation3 + $0x428] sm:$0xff]
          %v731 = vld [vmem:[#allocation3 + $0x430] sm:$0xff]
          %v732 = vld [vmem:[#allocation3 + $0x438] sm:$0xff]
          %v733 = vld [vmem:[#allocation3 + $0x440] sm:$0xff]
          %v734 = vld [vmem:[#allocation3 + $0x448] sm:$0xff]
          %v735 = vld [vmem:[#allocation3 + $0x450] sm:$0xff]
          %v736 = vld [vmem:[#allocation3 + $0x458] sm:$0xff]
          %v737 = vld [vmem:[#allocation3 + $0x460] sm:$0xff]
          %v738 = vld [vmem:[#allocation3 + $0x468] sm:$0xff]
          %v739 = vld [vmem:[#allocation3 + $0x470] sm:$0xff]
          %v740 = vld [vmem:[#allocation3 + $0x478] sm:$0xff]
          %v741 = vld [vmem:[#allocation3 + $0x480] sm:$0xff]
          %v742 = vld [vmem:[#allocation3 + $0x488] sm:$0xff]
          %v743 = vld [vmem:[#allocation3 + $0x490] sm:$0xff]
          %v744 = vld [vmem:[#allocation3 + $0x498] sm:$0xff]
          %v745 = vld [vmem:[#allocation3 + $0x4a0] sm:$0xff]
          %v746 = vld [vmem:[#allocation3 + $0x4a8] sm:$0xff]
          %v747 = vld [vmem:[#allocation3 + $0x4b0] sm:$0xff]
          %v748 = vld [vmem:[#allocation3 + $0x4b8] sm:$0xff]
          %v749 = vld [vmem:[#allocation3 + $0x4c0] sm:$0xff]
          %v750 = vld [vmem:[#allocation3 + $0x4c8] sm:$0xff]
          %v751 = vld [vmem:[#allocation3 + $0x4d0] sm:$0xff]
          %v752 = vld [vmem:[#allocation3 + $0x4d8] sm:$0xff]
          %v753 = vld [vmem:[#allocation3 + $0x4e0] sm:$0xff]
          %v754 = vld [vmem:[#allocation3 + $0x4e8] sm:$0xff]
          %v755 = vld [vmem:[#allocation3 + $0x4f0] sm:$0xff]
          %v756 = vld [vmem:[#allocation3 + $0x4f8] sm:$0xff]
          %v757 = vld [vmem:[#allocation3 + $0x500] sm:$0xff]
          %v758 = vld [vmem:[#allocation3 + $0x508] sm:$0xff]
          %v759 = vld [vmem:[#allocation3 + $0x510] sm:$0xff]
          %v760 = vld [vmem:[#allocation3 + $0x518] sm:$0xff]
          %v761 = vld [vmem:[#allocation3 + $0x520] sm:$0xff]
          %v762 = vld [vmem:[#allocation3 + $0x528] sm:$0xff]
          %v763 = vld [vmem:[#allocation3 + $0x530] sm:$0xff]
          %v764 = vld [vmem:[#allocation3 + $0x538] sm:$0xff]
          %v765 = vld [vmem:[#allocation3 + $0x540] sm:$0xff]
          %v766 = vld [vmem:[#allocation3 + $0x548] sm:$0xff]
          %v767 = vld [vmem:[#allocation3 + $0x550] sm:$0xff]
          %v768 = vld [vmem:[#allocation3 + $0x558] sm:$0xff]
          %v769 = vld [vmem:[#allocation3 + $0x560] sm:$0xff]
          %v770 = vld [vmem:[#allocation3 + $0x568] sm:$0xff]
          %v771 = vld [vmem:[#allocation3 + $0x570] sm:$0xff]
          %v772 = vld [vmem:[#allocation3 + $0x578] sm:$0xff]
          %v773 = vld [vmem:[#allocation3 + $0x580] sm:$0xff]
          %v774 = vld [vmem:[#allocation3 + $0x588] sm:$0xff]
          %v775 = vld [vmem:[#allocation3 + $0x590] sm:$0xff]
          %v776 = vld [vmem:[#allocation3 + $0x598] sm:$0xff]
          %v777 = vld [vmem:[#allocation3 + $0x5a0] sm:$0xff]
          %v778 = vld [vmem:[#allocation3 + $0x5a8] sm:$0xff]
          %v779 = vld [vmem:[#allocation3 + $0x5b0] sm:$0xff]
          %v780 = vld [vmem:[#allocation3 + $0x5b8] sm:$0xff]
          %v781 = vld [vmem:[#allocation3 + $0x5c0] sm:$0xff]
          %v782 = vld [vmem:[#allocation3 + $0x5c8] sm:$0xff]
          %v783 = vld [vmem:[#allocation3 + $0x5d0] sm:$0xff]
          %v784 = vld [vmem:[#allocation3 + $0x5d8] sm:$0xff]
          %v785 = vld [vmem:[#allocation3 + $0x5e0] sm:$0xff]
          %v786 = vld [vmem:[#allocation3 + $0x5e8] sm:$0xff]
          %v787 = vld [vmem:[#allocation3 + $0x5f0] sm:$0xff]
          %v788 = vld [vmem:[#allocation3 + $0x5f8] sm:$0xff]
          %v789 = vld [vmem:[#allocation3 + $0x600] sm:$0xff]
          %v790 = vld [vmem:[#allocation3 + $0x608] sm:$0xff]
          %v791 = vld [vmem:[#allocation3 + $0x610] sm:$0xff]
          %v792 = vld [vmem:[#allocation3 + $0x618] sm:$0xff]
          %v793 = vld [vmem:[#allocation3 + $0x620] sm:$0xff]
          %v794 = vld [vmem:[#allocation3 + $0x628] sm:$0xff]
          %v795 = vld [vmem:[#allocation3 + $0x630] sm:$0xff]
          %v796 = vld [vmem:[#allocation3 + $0x638] sm:$0xff]
          %v797 = vld [vmem:[#allocation3 + $0x640] sm:$0xff]
          %v798 = vld [vmem:[#allocation3 + $0x648] sm:$0xff]
          %v799 = vld [vmem:[#allocation3 + $0x650] sm:$0xff]
          %v800 = vld [vmem:[#allocation3 + $0x658] sm:$0xff]
          %v801 = vld [vmem:[#allocation3 + $0x660] sm:$0xff]
          %v802 = vld [vmem:[#allocation3 + $0x668] sm:$0xff]
          %v803 = vld [vmem:[#allocation3 + $0x670] sm:$0xff]
          %v804 = vld [vmem:[#allocation3 + $0x678] sm:$0xff]
          %v805 = vld [vmem:[#allocation3 + $0x680] sm:$0xff]
          %v806 = vld [vmem:[#allocation3 + $0x688] sm:$0xff]
          %v807 = vld [vmem:[#allocation3 + $0x690] sm:$0xff]
          %v808 = vld [vmem:[#allocation3 + $0x698] sm:$0xff]
          %v809 = vld [vmem:[#allocation3 + $0x6a0] sm:$0xff]
          %v810 = vld [vmem:[#allocation3 + $0x6a8] sm:$0xff]
          %v811 = vld [vmem:[#allocation3 + $0x6b0] sm:$0xff]
          %v812 = vld [vmem:[#allocation3 + $0x6b8] sm:$0xff]
          %v813 = vld [vmem:[#allocation3 + $0x6c0] sm:$0xff]
          %v814 = vld [vmem:[#allocation3 + $0x6c8] sm:$0xff]
          %v815 = vld [vmem:[#allocation3 + $0x6d0] sm:$0xff]
          %v816 = vld [vmem:[#allocation3 + $0x6d8] sm:$0xff]
          %v817 = vld [vmem:[#allocation3 + $0x6e0] sm:$0xff]
          %v818 = vld [vmem:[#allocation3 + $0x6e8] sm:$0xff]
          %v819 = vld [vmem:[#allocation3 + $0x6f0] sm:$0xff]
          %v820 = vld [vmem:[#allocation3 + $0x6f8] sm:$0xff]
          %v821 = vld [vmem:[#allocation3 + $0x700] sm:$0xff]
          %v822 = vld [vmem:[#allocation3 + $0x708] sm:$0xff]
          %v823 = vld [vmem:[#allocation3 + $0x710] sm:$0xff]
          %v824 = vld [vmem:[#allocation3 + $0x718] sm:$0xff]
          %v825 = vld [vmem:[#allocation3 + $0x720] sm:$0xff]
          %v826 = vld [vmem:[#allocation3 + $0x728] sm:$0xff]
          %v827 = vld [vmem:[#allocation3 + $0x730] sm:$0xff]
          %v828 = vld [vmem:[#allocation3 + $0x738] sm:$0xff]
          %v829 = vld [vmem:[#allocation3 + $0x740] sm:$0xff]
          %v830 = vld [vmem:[#allocation3 + $0x748] sm:$0xff]
          %v831 = vld [vmem:[#allocation3 + $0x750] sm:$0xff]
          %v832 = vld [vmem:[#allocation3 + $0x758] sm:$0xff]
          %v833 = vld [vmem:[#allocation3 + $0x760] sm:$0xff]
          %v834 = vld [vmem:[#allocation3 + $0x768] sm:$0xff]
          %v835 = vld [vmem:[#allocation3 + $0x770] sm:$0xff]
          %v836 = vld [vmem:[#allocation3 + $0x778] sm:$0xff]
          %v837 = vld [vmem:[#allocation3 + $0x780] sm:$0xff]
          %v838 = vld [vmem:[#allocation3 + $0x788] sm:$0xff]
          %v839 = vld [vmem:[#allocation3 + $0x790] sm:$0xff]
          %v840 = vld [vmem:[#allocation3 + $0x798] sm:$0xff]
          %v841 = vld [vmem:[#allocation3 + $0x7a0] sm:$0xff]
          %v842 = vld [vmem:[#allocation3 + $0x7a8] sm:$0xff]
          %v843 = vld [vmem:[#allocation3 + $0x7b0] sm:$0xff]
          %v844 = vld [vmem:[#allocation3 + $0x7b8] sm:$0xff]
          %v845 = vld [vmem:[#allocation3 + $0x7c0] sm:$0xff]
          %v846 = vld [vmem:[#allocation3 + $0x7c8] sm:$0xff]
          %v847 = vld [vmem:[#allocation3 + $0x7d0] sm:$0xff]
          %v848 = vld [vmem:[#allocation3 + $0x7d8] sm:$0xff]
          %v849 = vld [vmem:[#allocation3 + $0x7e0] sm:$0xff]
          %v850 = vld [vmem:[#allocation3 + $0x7e8] sm:$0xff]
          %v851 = vld [vmem:[#allocation3 + $0x7f0] sm:$0xff]
          %v852 = vld [vmem:[#allocation3 + $0x7f8] sm:$0xff]
          %v1109 = vunpack.c.l.b16 %v597
          %v1110 = vunpack.c.h.b16 %v597
          %v1111 = vunpack.c.l.b16 %v598
          %v1112 = vunpack.c.h.b16 %v598
          %v1113 = vunpack.c.l.b16 %v599
          %v1114 = vunpack.c.h.b16 %v599
          %v1115 = vunpack.c.l.b16 %v600
          %v1116 = vunpack.c.h.b16 %v600
          %v1117 = vunpack.c.l.b16 %v601
          %v1118 = vunpack.c.h.b16 %v601
          %v1119 = vunpack.c.l.b16 %v602
          %v1120 = vunpack.c.h.b16 %v602
          %v1121 = vunpack.c.l.b16 %v603
          %v1122 = vunpack.c.h.b16 %v603
          %v1123 = vunpack.c.l.b16 %v604
          %v1124 = vunpack.c.h.b16 %v604
          %v1125 = vunpack.c.l.b16 %v605
          %v1126 = vunpack.c.h.b16 %v605
          %v1127 = vunpack.c.l.b16 %v606
          %v1128 = vunpack.c.h.b16 %v606
          %v1129 = vunpack.c.l.b16 %v607
          %v1130 = vunpack.c.h.b16 %v607
          %v1131 = vunpack.c.l.b16 %v608
          %v1132 = vunpack.c.h.b16 %v608
          %v1133 = vunpack.c.l.b16 %v609
          %v1134 = vunpack.c.h.b16 %v609
          %v1135 = vunpack.c.l.b16 %v610
          %v1136 = vunpack.c.h.b16 %v610
          %v1137 = vunpack.c.l.b16 %v611
          %v1138 = vunpack.c.h.b16 %v611
          %v1139 = vunpack.c.l.b16 %v612
          %v1140 = vunpack.c.h.b16 %v612
          %v1141 = vunpack.c.l.b16 %v613
          %v1142 = vunpack.c.h.b16 %v613
          %v1143 = vunpack.c.l.b16 %v614
          %v1144 = vunpack.c.h.b16 %v614
          %v1145 = vunpack.c.l.b16 %v615
          %v1146 = vunpack.c.h.b16 %v615
          %v1147 = vunpack.c.l.b16 %v616
          %v1148 = vunpack.c.h.b16 %v616
          %v1149 = vunpack.c.l.b16 %v617
          %v1150 = vunpack.c.h.b16 %v617
          %v1151 = vunpack.c.l.b16 %v618
          %v1152 = vunpack.c.h.b16 %v618
          %v1153 = vunpack.c.l.b16 %v619
          %v1154 = vunpack.c.h.b16 %v619
          %v1155 = vunpack.c.l.b16 %v620
          %v1156 = vunpack.c.h.b16 %v620
          %v1157 = vunpack.c.l.b16 %v621
          %v1158 = vunpack.c.h.b16 %v621
          %v1159 = vunpack.c.l.b16 %v622
          %v1160 = vunpack.c.h.b16 %v622
          %v1161 = vunpack.c.l.b16 %v623
          %v1162 = vunpack.c.h.b16 %v623
          %v1163 = vunpack.c.l.b16 %v624
          %v1164 = vunpack.c.h.b16 %v624
          %v1165 = vunpack.c.l.b16 %v625
          %v1166 = vunpack.c.h.b16 %v625
          %v1167 = vunpack.c.l.b16 %v626
          %v1168 = vunpack.c.h.b16 %v626
          %v1169 = vunpack.c.l.b16 %v627
          %v1170 = vunpack.c.h.b16 %v627
          %v1171 = vunpack.c.l.b16 %v628
          %v1172 = vunpack.c.h.b16 %v628
          %v1173 = vunpack.c.l.b16 %v629
          %v1174 = vunpack.c.h.b16 %v629
          %v1175 = vunpack.c.l.b16 %v630
          %v1176 = vunpack.c.h.b16 %v630
          %v1177 = vunpack.c.l.b16 %v631
          %v1178 = vunpack.c.h.b16 %v631
          %v1179 = vunpack.c.l.b16 %v632
          %v1180 = vunpack.c.h.b16 %v632
          %v1181 = vunpack.c.l.b16 %v633
          %v1182 = vunpack.c.h.b16 %v633
          %v1183 = vunpack.c.l.b16 %v634
          %v1184 = vunpack.c.h.b16 %v634
          %v1185 = vunpack.c.l.b16 %v635
          %v1186 = vunpack.c.h.b16 %v635
          %v1187 = vunpack.c.l.b16 %v636
          %v1188 = vunpack.c.h.b16 %v636
          %v1189 = vunpack.c.l.b16 %v637
          %v1190 = vunpack.c.h.b16 %v637
          %v1191 = vunpack.c.l.b16 %v638
          %v1192 = vunpack.c.h.b16 %v638
          %v1193 = vunpack.c.l.b16 %v639
          %v1194 = vunpack.c.h.b16 %v639
          %v1195 = vunpack.c.l.b16 %v640
          %v1196 = vunpack.c.h.b16 %v640
          %v1197 = vunpack.c.l.b16 %v641
          %v1198 = vunpack.c.h.b16 %v641
          %v1199 = vunpack.c.l.b16 %v642
          %v1200 = vunpack.c.h.b16 %v642
          %v1201 = vunpack.c.l.b16 %v643
          %v1202 = vunpack.c.h.b16 %v643
          %v1203 = vunpack.c.l.b16 %v644
          %v1204 = vunpack.c.h.b16 %v644
          %v1205 = vunpack.c.l.b16 %v645
          %v1206 = vunpack.c.h.b16 %v645
          %v1207 = vunpack.c.l.b16 %v646
          %v1208 = vunpack.c.h.b16 %v646
          %v1209 = vunpack.c.l.b16 %v647
          %v1210 = vunpack.c.h.b16 %v647
          %v1211 = vunpack.c.l.b16 %v648
          %v1212 = vunpack.c.h.b16 %v648
          %v1213 = vunpack.c.l.b16 %v649
          %v1214 = vunpack.c.h.b16 %v649
          %v1215 = vunpack.c.l.b16 %v650
          %v1216 = vunpack.c.h.b16 %v650
          %v1217 = vunpack.c.l.b16 %v651
          %v1218 = vunpack.c.h.b16 %v651
          %v1219 = vunpack.c.l.b16 %v652
          %v1220 = vunpack.c.h.b16 %v652
          %v1221 = vunpack.c.l.b16 %v653
          %v1222 = vunpack.c.h.b16 %v653
          %v1223 = vunpack.c.l.b16 %v654
          %v1224 = vunpack.c.h.b16 %v654
          %v1225 = vunpack.c.l.b16 %v655
          %v1226 = vunpack.c.h.b16 %v655
          %v1227 = vunpack.c.l.b16 %v656
          %v1228 = vunpack.c.h.b16 %v656
          %v1229 = vunpack.c.l.b16 %v657
          %v1230 = vunpack.c.h.b16 %v657
          %v1231 = vunpack.c.l.b16 %v658
          %v1232 = vunpack.c.h.b16 %v658
          %v1233 = vunpack.c.l.b16 %v659
          %v1234 = vunpack.c.h.b16 %v659
          %v1235 = vunpack.c.l.b16 %v660
          %v1236 = vunpack.c.h.b16 %v660
          %v1237 = vunpack.c.l.b16 %v661
          %v1238 = vunpack.c.h.b16 %v661
          %v1239 = vunpack.c.l.b16 %v662
          %v1240 = vunpack.c.h.b16 %v662
          %v1241 = vunpack.c.l.b16 %v663
          %v1242 = vunpack.c.h.b16 %v663
          %v1243 = vunpack.c.l.b16 %v664
          %v1244 = vunpack.c.h.b16 %v664
          %v1245 = vunpack.c.l.b16 %v665
          %v1246 = vunpack.c.h.b16 %v665
          %v1247 = vunpack.c.l.b16 %v666
          %v1248 = vunpack.c.h.b16 %v666
          %v1249 = vunpack.c.l.b16 %v667
          %v1250 = vunpack.c.h.b16 %v667
          %v1251 = vunpack.c.l.b16 %v668
          %v1252 = vunpack.c.h.b16 %v668
          %v1253 = vunpack.c.l.b16 %v669
          %v1254 = vunpack.c.h.b16 %v669
          %v1255 = vunpack.c.l.b16 %v670
          %v1256 = vunpack.c.h.b16 %v670
          %v1257 = vunpack.c.l.b16 %v671
          %v1258 = vunpack.c.h.b16 %v671
          %v1259 = vunpack.c.l.b16 %v672
          %v1260 = vunpack.c.h.b16 %v672
          %v1261 = vunpack.c.l.b16 %v673
          %v1262 = vunpack.c.h.b16 %v673
          %v1263 = vunpack.c.l.b16 %v674
          %v1264 = vunpack.c.h.b16 %v674
          %v1265 = vunpack.c.l.b16 %v675
          %v1266 = vunpack.c.h.b16 %v675
          %v1267 = vunpack.c.l.b16 %v676
          %v1268 = vunpack.c.h.b16 %v676
          %v1269 = vunpack.c.l.b16 %v677
          %v1270 = vunpack.c.h.b16 %v677
          %v1271 = vunpack.c.l.b16 %v678
          %v1272 = vunpack.c.h.b16 %v678
          %v1273 = vunpack.c.l.b16 %v679
          %v1274 = vunpack.c.h.b16 %v679
          %v1275 = vunpack.c.l.b16 %v680
          %v1276 = vunpack.c.h.b16 %v680
          %v1277 = vunpack.c.l.b16 %v681
          %v1278 = vunpack.c.h.b16 %v681
          %v1279 = vunpack.c.l.b16 %v682
          %v1280 = vunpack.c.h.b16 %v682
          %v1281 = vunpack.c.l.b16 %v683
          %v1282 = vunpack.c.h.b16 %v683
          %v1283 = vunpack.c.l.b16 %v684
          %v1284 = vunpack.c.h.b16 %v684
          %v1285 = vunpack.c.l.b16 %v685
          %v1286 = vunpack.c.h.b16 %v685
          %v1287 = vunpack.c.l.b16 %v686
          %v1288 = vunpack.c.h.b16 %v686
          %v1289 = vunpack.c.l.b16 %v687
          %v1290 = vunpack.c.h.b16 %v687
          %v1291 = vunpack.c.l.b16 %v688
          %v1292 = vunpack.c.h.b16 %v688
          %v1293 = vunpack.c.l.b16 %v689
          %v1294 = vunpack.c.h.b16 %v689
          %v1295 = vunpack.c.l.b16 %v690
          %v1296 = vunpack.c.h.b16 %v690
          %v1297 = vunpack.c.l.b16 %v691
          %v1298 = vunpack.c.h.b16 %v691
          %v1299 = vunpack.c.l.b16 %v692
          %v1300 = vunpack.c.h.b16 %v692
          %v1301 = vunpack.c.l.b16 %v693
          %v1302 = vunpack.c.h.b16 %v693
          %v1303 = vunpack.c.l.b16 %v694
          %v1304 = vunpack.c.h.b16 %v694
          %v1305 = vunpack.c.l.b16 %v695
          %v1306 = vunpack.c.h.b16 %v695
          %v1307 = vunpack.c.l.b16 %v696
          %v1308 = vunpack.c.h.b16 %v696
          %v1309 = vunpack.c.l.b16 %v697
          %v1310 = vunpack.c.h.b16 %v697
          %v1311 = vunpack.c.l.b16 %v698
          %v1312 = vunpack.c.h.b16 %v698
          %v1313 = vunpack.c.l.b16 %v699
          %v1314 = vunpack.c.h.b16 %v699
          %v1315 = vunpack.c.l.b16 %v700
          %v1316 = vunpack.c.h.b16 %v700
          %v1317 = vunpack.c.l.b16 %v701
          %v1318 = vunpack.c.h.b16 %v701
          %v1319 = vunpack.c.l.b16 %v702
          %v1320 = vunpack.c.h.b16 %v702
          %v1321 = vunpack.c.l.b16 %v703
          %v1322 = vunpack.c.h.b16 %v703
          %v1323 = vunpack.c.l.b16 %v704
          %v1324 = vunpack.c.h.b16 %v704
          %v1325 = vunpack.c.l.b16 %v705
          %v1326 = vunpack.c.h.b16 %v705
          %v1327 = vunpack.c.l.b16 %v706
          %v1328 = vunpack.c.h.b16 %v706
          %v1329 = vunpack.c.l.b16 %v707
          %v1330 = vunpack.c.h.b16 %v707
          %v1331 = vunpack.c.l.b16 %v708
          %v1332 = vunpack.c.h.b16 %v708
          %v1333 = vunpack.c.l.b16 %v709
          %v1334 = vunpack.c.h.b16 %v709
          %v1335 = vunpack.c.l.b16 %v710
          %v1336 = vunpack.c.h.b16 %v710
          %v1337 = vunpack.c.l.b16 %v711
          %v1338 = vunpack.c.h.b16 %v711
          %v1339 = vunpack.c.l.b16 %v712
          %v1340 = vunpack.c.h.b16 %v712
          %v1341 = vunpack.c.l.b16 %v713
          %v1342 = vunpack.c.h.b16 %v713
          %v1343 = vunpack.c.l.b16 %v714
          %v1344 = vunpack.c.h.b16 %v714
          %v1345 = vunpack.c.l.b16 %v715
          %v1346 = vunpack.c.h.b16 %v715
          %v1347 = vunpack.c.l.b16 %v716
          %v1348 = vunpack.c.h.b16 %v716
          %v1349 = vunpack.c.l.b16 %v717
          %v1350 = vunpack.c.h.b16 %v717
          %v1351 = vunpack.c.l.b16 %v718
          %v1352 = vunpack.c.h.b16 %v718
          %v1353 = vunpack.c.l.b16 %v719
          %v1354 = vunpack.c.h.b16 %v719
          %v1355 = vunpack.c.l.b16 %v720
          %v1356 = vunpack.c.h.b16 %v720
          %v1357 = vunpack.c.l.b16 %v721
          %v1358 = vunpack.c.h.b16 %v721
          %v1359 = vunpack.c.l.b16 %v722
          %v1360 = vunpack.c.h.b16 %v722
          %v1361 = vunpack.c.l.b16 %v723
          %v1362 = vunpack.c.h.b16 %v723
          %v1363 = vunpack.c.l.b16 %v724
          %v1364 = vunpack.c.h.b16 %v724
          %v1365 = vunpack.c.l.b16 %v725
          %v1366 = vunpack.c.h.b16 %v725
          %v1367 = vunpack.c.l.b16 %v726
          %v1368 = vunpack.c.h.b16 %v726
          %v1369 = vunpack.c.l.b16 %v727
          %v1370 = vunpack.c.h.b16 %v727
          %v1371 = vunpack.c.l.b16 %v728
          %v1372 = vunpack.c.h.b16 %v728
          %v1373 = vunpack.c.l.b16 %v729
          %v1374 = vunpack.c.h.b16 %v729
          %v1375 = vunpack.c.l.b16 %v730
          %v1376 = vunpack.c.h.b16 %v730
          %v1377 = vunpack.c.l.b16 %v731
          %v1378 = vunpack.c.h.b16 %v731
          %v1379 = vunpack.c.l.b16 %v732
          %v1380 = vunpack.c.h.b16 %v732
          %v1381 = vunpack.c.l.b16 %v733
          %v1382 = vunpack.c.h.b16 %v733
          %v1383 = vunpack.c.l.b16 %v734
          %v1384 = vunpack.c.h.b16 %v734
          %v1385 = vunpack.c.l.b16 %v735
          %v1386 = vunpack.c.h.b16 %v735
          %v1387 = vunpack.c.l.b16 %v736
          %v1388 = vunpack.c.h.b16 %v736
          %v1389 = vunpack.c.l.b16 %v737
          %v1390 = vunpack.c.h.b16 %v737
          %v1391 = vunpack.c.l.b16 %v738
          %v1392 = vunpack.c.h.b16 %v738
          %v1393 = vunpack.c.l.b16 %v739
          %v1394 = vunpack.c.h.b16 %v739
          %v1395 = vunpack.c.l.b16 %v740
          %v1396 = vunpack.c.h.b16 %v740
          %v1397 = vunpack.c.l.b16 %v741
          %v1398 = vunpack.c.h.b16 %v741
          %v1399 = vunpack.c.l.b16 %v742
          %v1400 = vunpack.c.h.b16 %v742
          %v1401 = vunpack.c.l.b16 %v743
          %v1402 = vunpack.c.h.b16 %v743
          %v1403 = vunpack.c.l.b16 %v744
          %v1404 = vunpack.c.h.b16 %v744
          %v1405 = vunpack.c.l.b16 %v745
          %v1406 = vunpack.c.h.b16 %v745
          %v1407 = vunpack.c.l.b16 %v746
          %v1408 = vunpack.c.h.b16 %v746
          %v1409 = vunpack.c.l.b16 %v747
          %v1410 = vunpack.c.h.b16 %v747
          %v1411 = vunpack.c.l.b16 %v748
          %v1412 = vunpack.c.h.b16 %v748
          %v1413 = vunpack.c.l.b16 %v749
          %v1414 = vunpack.c.h.b16 %v749
          %v1415 = vunpack.c.l.b16 %v750
          %v1416 = vunpack.c.h.b16 %v750
          %v1417 = vunpack.c.l.b16 %v751
          %v1418 = vunpack.c.h.b16 %v751
          %v1419 = vunpack.c.l.b16 %v752
          %v1420 = vunpack.c.h.b16 %v752
          %v1421 = vunpack.c.l.b16 %v753
          %v1422 = vunpack.c.h.b16 %v753
          %v1423 = vunpack.c.l.b16 %v754
          %v1424 = vunpack.c.h.b16 %v754
          %v1425 = vunpack.c.l.b16 %v755
          %v1426 = vunpack.c.h.b16 %v755
          %v1427 = vunpack.c.l.b16 %v756
          %v1428 = vunpack.c.h.b16 %v756
          %v1429 = vunpack.c.l.b16 %v757
          %v1430 = vunpack.c.h.b16 %v757
          %v1431 = vunpack.c.l.b16 %v758
          %v1432 = vunpack.c.h.b16 %v758
          %v1433 = vunpack.c.l.b16 %v759
          %v1434 = vunpack.c.h.b16 %v759
          %v1435 = vunpack.c.l.b16 %v760
          %v1436 = vunpack.c.h.b16 %v760
          %v1437 = vunpack.c.l.b16 %v761
          %v1438 = vunpack.c.h.b16 %v761
          %v1439 = vunpack.c.l.b16 %v762
          %v1440 = vunpack.c.h.b16 %v762
          %v1441 = vunpack.c.l.b16 %v763
          %v1442 = vunpack.c.h.b16 %v763
          %v1443 = vunpack.c.l.b16 %v764
          %v1444 = vunpack.c.h.b16 %v764
          %v1445 = vunpack.c.l.b16 %v765
          %v1446 = vunpack.c.h.b16 %v765
          %v1447 = vunpack.c.l.b16 %v766
          %v1448 = vunpack.c.h.b16 %v766
          %v1449 = vunpack.c.l.b16 %v767
          %v1450 = vunpack.c.h.b16 %v767
          %v1451 = vunpack.c.l.b16 %v768
          %v1452 = vunpack.c.h.b16 %v768
          %v1453 = vunpack.c.l.b16 %v769
          %v1454 = vunpack.c.h.b16 %v769
          %v1455 = vunpack.c.l.b16 %v770
          %v1456 = vunpack.c.h.b16 %v770
          %v1457 = vunpack.c.l.b16 %v771
          %v1458 = vunpack.c.h.b16 %v771
          %v1459 = vunpack.c.l.b16 %v772
          %v1460 = vunpack.c.h.b16 %v772
          %v1461 = vunpack.c.l.b16 %v773
          %v1462 = vunpack.c.h.b16 %v773
          %v1463 = vunpack.c.l.b16 %v774
          %v1464 = vunpack.c.h.b16 %v774
          %v1465 = vunpack.c.l.b16 %v775
          %v1466 = vunpack.c.h.b16 %v775
          %v1467 = vunpack.c.l.b16 %v776
          %v1468 = vunpack.c.h.b16 %v776
          %v1469 = vunpack.c.l.b16 %v777
          %v1470 = vunpack.c.h.b16 %v777
          %v1471 = vunpack.c.l.b16 %v778
          %v1472 = vunpack.c.h.b16 %v778
          %v1473 = vunpack.c.l.b16 %v779
          %v1474 = vunpack.c.h.b16 %v779
          %v1475 = vunpack.c.l.b16 %v780
          %v1476 = vunpack.c.h.b16 %v780
          %v1477 = vunpack.c.l.b16 %v781
          %v1478 = vunpack.c.h.b16 %v781
          %v1479 = vunpack.c.l.b16 %v782
          %v1480 = vunpack.c.h.b16 %v782
          %v1481 = vunpack.c.l.b16 %v783
          %v1482 = vunpack.c.h.b16 %v783
          %v1483 = vunpack.c.l.b16 %v784
          %v1484 = vunpack.c.h.b16 %v784
          %v1485 = vunpack.c.l.b16 %v785
          %v1486 = vunpack.c.h.b16 %v785
          %v1487 = vunpack.c.l.b16 %v786
          %v1488 = vunpack.c.h.b16 %v786
          %v1489 = vunpack.c.l.b16 %v787
          %v1490 = vunpack.c.h.b16 %v787
          %v1491 = vunpack.c.l.b16 %v788
          %v1492 = vunpack.c.h.b16 %v788
          %v1493 = vunpack.c.l.b16 %v789
          %v1494 = vunpack.c.h.b16 %v789
          %v1495 = vunpack.c.l.b16 %v790
          %v1496 = vunpack.c.h.b16 %v790
          %v1497 = vunpack.c.l.b16 %v791
          %v1498 = vunpack.c.h.b16 %v791
          %v1499 = vunpack.c.l.b16 %v792
          %v1500 = vunpack.c.h.b16 %v792
          %v1501 = vunpack.c.l.b16 %v793
          %v1502 = vunpack.c.h.b16 %v793
          %v1503 = vunpack.c.l.b16 %v794
          %v1504 = vunpack.c.h.b16 %v794
          %v1505 = vunpack.c.l.b16 %v795
          %v1506 = vunpack.c.h.b16 %v795
          %v1507 = vunpack.c.l.b16 %v796
          %v1508 = vunpack.c.h.b16 %v796
          %v1509 = vunpack.c.l.b16 %v797
          %v1510 = vunpack.c.h.b16 %v797
          %v1511 = vunpack.c.l.b16 %v798
          %v1512 = vunpack.c.h.b16 %v798
          %v1513 = vunpack.c.l.b16 %v799
          %v1514 = vunpack.c.h.b16 %v799
          %v1515 = vunpack.c.l.b16 %v800
          %v1516 = vunpack.c.h.b16 %v800
          %v1517 = vunpack.c.l.b16 %v801
          %v1518 = vunpack.c.h.b16 %v801
          %v1519 = vunpack.c.l.b16 %v802
          %v1520 = vunpack.c.h.b16 %v802
          %v1521 = vunpack.c.l.b16 %v803
          %v1522 = vunpack.c.h.b16 %v803
          %v1523 = vunpack.c.l.b16 %v804
          %v1524 = vunpack.c.h.b16 %v804
          %v1525 = vunpack.c.l.b16 %v805
          %v1526 = vunpack.c.h.b16 %v805
          %v1527 = vunpack.c.l.b16 %v806
          %v1528 = vunpack.c.h.b16 %v806
          %v1529 = vunpack.c.l.b16 %v807
          %v1530 = vunpack.c.h.b16 %v807
          %v1531 = vunpack.c.l.b16 %v808
          %v1532 = vunpack.c.h.b16 %v808
          %v1533 = vunpack.c.l.b16 %v809
          %v1534 = vunpack.c.h.b16 %v809
          %v1535 = vunpack.c.l.b16 %v810
          %v1536 = vunpack.c.h.b16 %v810
          %v1537 = vunpack.c.l.b16 %v811
          %v1538 = vunpack.c.h.b16 %v811
          %v1539 = vunpack.c.l.b16 %v812
          %v1540 = vunpack.c.h.b16 %v812
          %v1541 = vunpack.c.l.b16 %v813
          %v1542 = vunpack.c.h.b16 %v813
          %v1543 = vunpack.c.l.b16 %v814
          %v1544 = vunpack.c.h.b16 %v814
          %v1545 = vunpack.c.l.b16 %v815
          %v1546 = vunpack.c.h.b16 %v815
          %v1547 = vunpack.c.l.b16 %v816
          %v1548 = vunpack.c.h.b16 %v816
          %v1549 = vunpack.c.l.b16 %v817
          %v1550 = vunpack.c.h.b16 %v817
          %v1551 = vunpack.c.l.b16 %v818
          %v1552 = vunpack.c.h.b16 %v818
          %v1553 = vunpack.c.l.b16 %v819
          %v1554 = vunpack.c.h.b16 %v819
          %v1555 = vunpack.c.l.b16 %v820
          %v1556 = vunpack.c.h.b16 %v820
          %v1557 = vunpack.c.l.b16 %v821
          %v1558 = vunpack.c.h.b16 %v821
          %v1559 = vunpack.c.l.b16 %v822
          %v1560 = vunpack.c.h.b16 %v822
          %v1561 = vunpack.c.l.b16 %v823
          %v1562 = vunpack.c.h.b16 %v823
          %v1563 = vunpack.c.l.b16 %v824
          %v1564 = vunpack.c.h.b16 %v824
          %v1565 = vunpack.c.l.b16 %v825
          %v1566 = vunpack.c.h.b16 %v825
          %v1567 = vunpack.c.l.b16 %v826
          %v1568 = vunpack.c.h.b16 %v826
          %v1569 = vunpack.c.l.b16 %v827
          %v1570 = vunpack.c.h.b16 %v827
          %v1571 = vunpack.c.l.b16 %v828
          %v1572 = vunpack.c.h.b16 %v828
          %v1573 = vunpack.c.l.b16 %v829
          %v1574 = vunpack.c.h.b16 %v829
          %v1575 = vunpack.c.l.b16 %v830
          %v1576 = vunpack.c.h.b16 %v830
          %v1577 = vunpack.c.l.b16 %v831
          %v1578 = vunpack.c.h.b16 %v831
          %v1579 = vunpack.c.l.b16 %v832
          %v1580 = vunpack.c.h.b16 %v832
          %v1581 = vunpack.c.l.b16 %v833
          %v1582 = vunpack.c.h.b16 %v833
          %v1583 = vunpack.c.l.b16 %v834
          %v1584 = vunpack.c.h.b16 %v834
          %v1585 = vunpack.c.l.b16 %v835
          %v1586 = vunpack.c.h.b16 %v835
          %v1587 = vunpack.c.l.b16 %v836
          %v1588 = vunpack.c.h.b16 %v836
          %v1589 = vunpack.c.l.b16 %v837
          %v1590 = vunpack.c.h.b16 %v837
          %v1591 = vunpack.c.l.b16 %v838
          %v1592 = vunpack.c.h.b16 %v838
          %v1593 = vunpack.c.l.b16 %v839
          %v1594 = vunpack.c.h.b16 %v839
          %v1595 = vunpack.c.l.b16 %v840
          %v1596 = vunpack.c.h.b16 %v840
          %v1597 = vunpack.c.l.b16 %v841
          %v1598 = vunpack.c.h.b16 %v841
          %v1599 = vunpack.c.l.b16 %v842
          %v1600 = vunpack.c.h.b16 %v842
          %v1601 = vunpack.c.l.b16 %v843
          %v1602 = vunpack.c.h.b16 %v843
          %v1603 = vunpack.c.l.b16 %v844
          %v1604 = vunpack.c.h.b16 %v844
          %v1605 = vunpack.c.l.b16 %v845
          %v1606 = vunpack.c.h.b16 %v845
          %v1607 = vunpack.c.l.b16 %v846
          %v1608 = vunpack.c.h.b16 %v846
          %v1609 = vunpack.c.l.b16 %v847
          %v1610 = vunpack.c.h.b16 %v847
          %v1611 = vunpack.c.l.b16 %v848
          %v1612 = vunpack.c.h.b16 %v848
          %v1613 = vunpack.c.l.b16 %v849
          %v1614 = vunpack.c.h.b16 %v849
          %v1615 = vunpack.c.l.b16 %v850
          %v1616 = vunpack.c.h.b16 %v850
          %v1617 = vunpack.c.l.b16 %v851
          %v1618 = vunpack.c.h.b16 %v851
          %v1619 = vunpack.c.l.b16 %v852
          %v1620 = vunpack.c.h.b16 %v852
          %v1621 = vpack.c.b16 %v1141, %v1109
          %v1622 = vpack.c.b16 %v1142, %v1110
          %v1623 = vpack.c.b16 %v1143, %v1111
          %v1624 = vpack.c.b16 %v1144, %v1112
          %v1625 = vpack.c.b16 %v1145, %v1113
          %v1626 = vpack.c.b16 %v1146, %v1114
          %v1627 = vpack.c.b16 %v1147, %v1115
          %v1628 = vpack.c.b16 %v1148, %v1116
          %v1629 = vpack.c.b16 %v1149, %v1117
          %v1630 = vpack.c.b16 %v1150, %v1118
          %v1631 = vpack.c.b16 %v1151, %v1119
          %v1632 = vpack.c.b16 %v1152, %v1120
          %v1633 = vpack.c.b16 %v1153, %v1121
          %v1634 = vpack.c.b16 %v1154, %v1122
          %v1635 = vpack.c.b16 %v1155, %v1123
          %v1636 = vpack.c.b16 %v1156, %v1124
          %v1637 = vpack.c.b16 %v1157, %v1125
          %v1638 = vpack.c.b16 %v1158, %v1126
          %v1639 = vpack.c.b16 %v1159, %v1127
          %v1640 = vpack.c.b16 %v1160, %v1128
          %v1641 = vpack.c.b16 %v1161, %v1129
          %v1642 = vpack.c.b16 %v1162, %v1130
          %v1643 = vpack.c.b16 %v1163, %v1131
          %v1644 = vpack.c.b16 %v1164, %v1132
          %v1645 = vpack.c.b16 %v1165, %v1133
          %v1646 = vpack.c.b16 %v1166, %v1134
          %v1647 = vpack.c.b16 %v1167, %v1135
          %v1648 = vpack.c.b16 %v1168, %v1136
          %v1649 = vpack.c.b16 %v1169, %v1137
          %v1650 = vpack.c.b16 %v1170, %v1138
          %v1651 = vpack.c.b16 %v1171, %v1139
          %v1652 = vpack.c.b16 %v1172, %v1140
          %v1653 = vpack.c.b16 %v1205, %v1173
          %v1654 = vpack.c.b16 %v1206, %v1174
          %v1655 = vpack.c.b16 %v1207, %v1175
          %v1656 = vpack.c.b16 %v1208, %v1176
          %v1657 = vpack.c.b16 %v1209, %v1177
          %v1658 = vpack.c.b16 %v1210, %v1178
          %v1659 = vpack.c.b16 %v1211, %v1179
          %v1660 = vpack.c.b16 %v1212, %v1180
          %v1661 = vpack.c.b16 %v1213, %v1181
          %v1662 = vpack.c.b16 %v1214, %v1182
          %v1663 = vpack.c.b16 %v1215, %v1183
          %v1664 = vpack.c.b16 %v1216, %v1184
          %v1665 = vpack.c.b16 %v1217, %v1185
          %v1666 = vpack.c.b16 %v1218, %v1186
          %v1667 = vpack.c.b16 %v1219, %v1187
          %v1668 = vpack.c.b16 %v1220, %v1188
          %v1669 = vpack.c.b16 %v1221, %v1189
          %v1670 = vpack.c.b16 %v1222, %v1190
          %v1671 = vpack.c.b16 %v1223, %v1191
          %v1672 = vpack.c.b16 %v1224, %v1192
          %v1673 = vpack.c.b16 %v1225, %v1193
          %v1674 = vpack.c.b16 %v1226, %v1194
          %v1675 = vpack.c.b16 %v1227, %v1195
          %v1676 = vpack.c.b16 %v1228, %v1196
          %v1677 = vpack.c.b16 %v1229, %v1197
          %v1678 = vpack.c.b16 %v1230, %v1198
          %v1679 = vpack.c.b16 %v1231, %v1199
          %v1680 = vpack.c.b16 %v1232, %v1200
          %v1681 = vpack.c.b16 %v1233, %v1201
          %v1682 = vpack.c.b16 %v1234, %v1202
          %v1683 = vpack.c.b16 %v1235, %v1203
          %v1684 = vpack.c.b16 %v1236, %v1204
          %v1685 = vpack.c.b16 %v1269, %v1237
          %v1686 = vpack.c.b16 %v1270, %v1238
          %v1687 = vpack.c.b16 %v1271, %v1239
          %v1688 = vpack.c.b16 %v1272, %v1240
          %v1689 = vpack.c.b16 %v1273, %v1241
          %v1690 = vpack.c.b16 %v1274, %v1242
          %v1691 = vpack.c.b16 %v1275, %v1243
          %v1692 = vpack.c.b16 %v1276, %v1244
          %v1693 = vpack.c.b16 %v1277, %v1245
          %v1694 = vpack.c.b16 %v1278, %v1246
          %v1695 = vpack.c.b16 %v1279, %v1247
          %v1696 = vpack.c.b16 %v1280, %v1248
          %v1697 = vpack.c.b16 %v1281, %v1249
          %v1698 = vpack.c.b16 %v1282, %v1250
          %v1699 = vpack.c.b16 %v1283, %v1251
          %v1700 = vpack.c.b16 %v1284, %v1252
          %v1701 = vpack.c.b16 %v1285, %v1253
          %v1702 = vpack.c.b16 %v1286, %v1254
          %v1703 = vpack.c.b16 %v1287, %v1255
          %v1704 = vpack.c.b16 %v1288, %v1256
          %v1705 = vpack.c.b16 %v1289, %v1257
          %v1706 = vpack.c.b16 %v1290, %v1258
          %v1707 = vpack.c.b16 %v1291, %v1259
          %v1708 = vpack.c.b16 %v1292, %v1260
          %v1709 = vpack.c.b16 %v1293, %v1261
          %v1710 = vpack.c.b16 %v1294, %v1262
          %v1711 = vpack.c.b16 %v1295, %v1263
          %v1712 = vpack.c.b16 %v1296, %v1264
          %v1713 = vpack.c.b16 %v1297, %v1265
          %v1714 = vpack.c.b16 %v1298, %v1266
          %v1715 = vpack.c.b16 %v1299, %v1267
          %v1716 = vpack.c.b16 %v1300, %v1268
          %v1717 = vpack.c.b16 %v1333, %v1301
          %v1718 = vpack.c.b16 %v1334, %v1302
          %v1719 = vpack.c.b16 %v1335, %v1303
          %v1720 = vpack.c.b16 %v1336, %v1304
          %v1721 = vpack.c.b16 %v1337, %v1305
          %v1722 = vpack.c.b16 %v1338, %v1306
          %v1723 = vpack.c.b16 %v1339, %v1307
          %v1724 = vpack.c.b16 %v1340, %v1308
          %v1725 = vpack.c.b16 %v1341, %v1309
          %v1726 = vpack.c.b16 %v1342, %v1310
          %v1727 = vpack.c.b16 %v1343, %v1311
          %v1728 = vpack.c.b16 %v1344, %v1312
          %v1729 = vpack.c.b16 %v1345, %v1313
          %v1730 = vpack.c.b16 %v1346, %v1314
          %v1731 = vpack.c.b16 %v1347, %v1315
          %v1732 = vpack.c.b16 %v1348, %v1316
          %v1733 = vpack.c.b16 %v1349, %v1317
          %v1734 = vpack.c.b16 %v1350, %v1318
          %v1735 = vpack.c.b16 %v1351, %v1319
          %v1736 = vpack.c.b16 %v1352, %v1320
          %v1737 = vpack.c.b16 %v1353, %v1321
          %v1738 = vpack.c.b16 %v1354, %v1322
          %v1739 = vpack.c.b16 %v1355, %v1323
          %v1740 = vpack.c.b16 %v1356, %v1324
          %v1741 = vpack.c.b16 %v1357, %v1325
          %v1742 = vpack.c.b16 %v1358, %v1326
          %v1743 = vpack.c.b16 %v1359, %v1327
          %v1744 = vpack.c.b16 %v1360, %v1328
          %v1745 = vpack.c.b16 %v1361, %v1329
          %v1746 = vpack.c.b16 %v1362, %v1330
          %v1747 = vpack.c.b16 %v1363, %v1331
          %v1748 = vpack.c.b16 %v1364, %v1332
          %v1749 = vpack.c.b16 %v1397, %v1365
          %v1750 = vpack.c.b16 %v1398, %v1366
          %v1751 = vpack.c.b16 %v1399, %v1367
          %v1752 = vpack.c.b16 %v1400, %v1368
          %v1753 = vpack.c.b16 %v1401, %v1369
          %v1754 = vpack.c.b16 %v1402, %v1370
          %v1755 = vpack.c.b16 %v1403, %v1371
          %v1756 = vpack.c.b16 %v1404, %v1372
          %v1757 = vpack.c.b16 %v1405, %v1373
          %v1758 = vpack.c.b16 %v1406, %v1374
          %v1759 = vpack.c.b16 %v1407, %v1375
          %v1760 = vpack.c.b16 %v1408, %v1376
          %v1761 = vpack.c.b16 %v1409, %v1377
          %v1762 = vpack.c.b16 %v1410, %v1378
          %v1763 = vpack.c.b16 %v1411, %v1379
          %v1764 = vpack.c.b16 %v1412, %v1380
          %v1765 = vpack.c.b16 %v1413, %v1381
          %v1766 = vpack.c.b16 %v1414, %v1382
          %v1767 = vpack.c.b16 %v1415, %v1383
          %v1768 = vpack.c.b16 %v1416, %v1384
          %v1769 = vpack.c.b16 %v1417, %v1385
          %v1770 = vpack.c.b16 %v1418, %v1386
          %v1771 = vpack.c.b16 %v1419, %v1387
          %v1772 = vpack.c.b16 %v1420, %v1388
          %v1773 = vpack.c.b16 %v1421, %v1389
          %v1774 = vpack.c.b16 %v1422, %v1390
          %v1775 = vpack.c.b16 %v1423, %v1391
          %v1776 = vpack.c.b16 %v1424, %v1392
          %v1777 = vpack.c.b16 %v1425, %v1393
          %v1778 = vpack.c.b16 %v1426, %v1394
          %v1779 = vpack.c.b16 %v1427, %v1395
          %v1780 = vpack.c.b16 %v1428, %v1396
          %v1781 = vpack.c.b16 %v1461, %v1429
          %v1782 = vpack.c.b16 %v1462, %v1430
          %v1783 = vpack.c.b16 %v1463, %v1431
          %v1784 = vpack.c.b16 %v1464, %v1432
          %v1785 = vpack.c.b16 %v1465, %v1433
          %v1786 = vpack.c.b16 %v1466, %v1434
          %v1787 = vpack.c.b16 %v1467, %v1435
          %v1788 = vpack.c.b16 %v1468, %v1436
          %v1789 = vpack.c.b16 %v1469, %v1437
          %v1790 = vpack.c.b16 %v1470, %v1438
          %v1791 = vpack.c.b16 %v1471, %v1439
          %v1792 = vpack.c.b16 %v1472, %v1440
          %v1793 = vpack.c.b16 %v1473, %v1441
          %v1794 = vpack.c.b16 %v1474, %v1442
          %v1795 = vpack.c.b16 %v1475, %v1443
          %v1796 = vpack.c.b16 %v1476, %v1444
          %v1797 = vpack.c.b16 %v1477, %v1445
          %v1798 = vpack.c.b16 %v1478, %v1446
          %v1799 = vpack.c.b16 %v1479, %v1447
          %v1800 = vpack.c.b16 %v1480, %v1448
          %v1801 = vpack.c.b16 %v1481, %v1449
          %v1802 = vpack.c.b16 %v1482, %v1450
          %v1803 = vpack.c.b16 %v1483, %v1451
          %v1804 = vpack.c.b16 %v1484, %v1452
          %v1805 = vpack.c.b16 %v1485, %v1453
          %v1806 = vpack.c.b16 %v1486, %v1454
          %v1807 = vpack.c.b16 %v1487, %v1455
          %v1808 = vpack.c.b16 %v1488, %v1456
          %v1809 = vpack.c.b16 %v1489, %v1457
          %v1810 = vpack.c.b16 %v1490, %v1458
          %v1811 = vpack.c.b16 %v1491, %v1459
          %v1812 = vpack.c.b16 %v1492, %v1460
          %v1813 = vpack.c.b16 %v1525, %v1493
          %v1814 = vpack.c.b16 %v1526, %v1494
          %v1815 = vpack.c.b16 %v1527, %v1495
          %v1816 = vpack.c.b16 %v1528, %v1496
          %v1817 = vpack.c.b16 %v1529, %v1497
          %v1818 = vpack.c.b16 %v1530, %v1498
          %v1819 = vpack.c.b16 %v1531, %v1499
          %v1820 = vpack.c.b16 %v1532, %v1500
          %v1821 = vpack.c.b16 %v1533, %v1501
          %v1822 = vpack.c.b16 %v1534, %v1502
          %v1823 = vpack.c.b16 %v1535, %v1503
          %v1824 = vpack.c.b16 %v1536, %v1504
          %v1825 = vpack.c.b16 %v1537, %v1505
          %v1826 = vpack.c.b16 %v1538, %v1506
          %v1827 = vpack.c.b16 %v1539, %v1507
          %v1828 = vpack.c.b16 %v1540, %v1508
          %v1829 = vpack.c.b16 %v1541, %v1509
          %v1830 = vpack.c.b16 %v1542, %v1510
          %v1831 = vpack.c.b16 %v1543, %v1511
          %v1832 = vpack.c.b16 %v1544, %v1512
          %v1833 = vpack.c.b16 %v1545, %v1513
          %v1834 = vpack.c.b16 %v1546, %v1514
          %v1835 = vpack.c.b16 %v1547, %v1515
          %v1836 = vpack.c.b16 %v1548, %v1516
          %v1837 = vpack.c.b16 %v1549, %v1517
          %v1838 = vpack.c.b16 %v1550, %v1518
          %v1839 = vpack.c.b16 %v1551, %v1519
          %v1840 = vpack.c.b16 %v1552, %v1520
          %v1841 = vpack.c.b16 %v1553, %v1521
          %v1842 = vpack.c.b16 %v1554, %v1522
          %v1843 = vpack.c.b16 %v1555, %v1523
          %v1844 = vpack.c.b16 %v1556, %v1524
          %v1845 = vpack.c.b16 %v1589, %v1557
          %v1846 = vpack.c.b16 %v1590, %v1558
          %v1847 = vpack.c.b16 %v1591, %v1559
          %v1848 = vpack.c.b16 %v1592, %v1560
          %v1849 = vpack.c.b16 %v1593, %v1561
          %v1850 = vpack.c.b16 %v1594, %v1562
          %v1851 = vpack.c.b16 %v1595, %v1563
          %v1852 = vpack.c.b16 %v1596, %v1564
          %v1853 = vpack.c.b16 %v1597, %v1565
          %v1854 = vpack.c.b16 %v1598, %v1566
          %v1855 = vpack.c.b16 %v1599, %v1567
          %v1856 = vpack.c.b16 %v1600, %v1568
          %v1857 = vpack.c.b16 %v1601, %v1569
          %v1858 = vpack.c.b16 %v1602, %v1570
          %v1859 = vpack.c.b16 %v1603, %v1571
          %v1860 = vpack.c.b16 %v1604, %v1572
          %v1861 = vpack.c.b16 %v1605, %v1573
          %v1862 = vpack.c.b16 %v1606, %v1574
          %v1863 = vpack.c.b16 %v1607, %v1575
          %v1864 = vpack.c.b16 %v1608, %v1576
          %v1865 = vpack.c.b16 %v1609, %v1577
          %v1866 = vpack.c.b16 %v1610, %v1578
          %v1867 = vpack.c.b16 %v1611, %v1579
          %v1868 = vpack.c.b16 %v1612, %v1580
          %v1869 = vpack.c.b16 %v1613, %v1581
          %v1870 = vpack.c.b16 %v1614, %v1582
          %v1871 = vpack.c.b16 %v1615, %v1583
          %v1872 = vpack.c.b16 %v1616, %v1584
          %v1873 = vpack.c.b16 %v1617, %v1585
          %v1874 = vpack.c.b16 %v1618, %v1586
          %v1875 = vpack.c.b16 %v1619, %v1587
          %v1876 = vpack.c.b16 %v1620, %v1588
          %2133 = vmatprep.subr.bf16.mxu0 %v1622
          %2134 = vmatpush1.bf16.msra.mxu0 %v1621
          %2135 = vmatprep.subr.bf16.mxu0 %v1654
          %2136 = vmatpush1.bf16.msra.mxu0 %v1653
          %2137 = vmatprep.subr.bf16.mxu0 %v1686
          %2138 = vmatpush1.bf16.msra.mxu0 %v1685
          %2139 = vmatprep.subr.bf16.mxu0 %v1718
          %2140 = vmatpush1.bf16.msra.mxu0 %v1717
          %2141 = vmatprep.subr.bf16.mxu0 %v1750
          %2142 = vmatpush1.bf16.msra.mxu0 %v1749
          %2143 = vmatprep.subr.bf16.mxu0 %v1782
          %2144 = vmatpush1.bf16.msra.mxu0 %v1781
          %2145 = vmatprep.subr.bf16.mxu0 %v1814
          %2146 = vmatpush1.bf16.msra.mxu0 %v1813
          %2147 = vmatprep.subr.bf16.mxu0 %v1846
          %2148 = vmatpush1.bf16.msra.mxu0 %v1845
          %2149 = vmatprep.subr.bf16.mxu0 0
          %2150 = vmatpush1.bf16.msra.mxu0 0
          %2151 = vmatprep.subr.bf16.mxu0 0
          %2152 = vmatpush1.bf16.msra.mxu0 0
          %2153 = vmatprep.subr.bf16.mxu0 0
          %2154 = vmatpush1.bf16.msra.mxu0 0
          %2155 = vmatprep.subr.bf16.mxu0 0
          %2156 = vmatpush1.bf16.msra.mxu0 0
          %2157 = vmatprep.subr.bf16.mxu0 0
          %2158 = vmatpush1.bf16.msra.mxu0 0
          %2159 = vmatprep.subr.bf16.mxu0 0
          %2160 = vmatpush1.bf16.msra.mxu0 0
          %2161 = vmatprep.subr.bf16.mxu0 0
          %2162 = vmatpush1.bf16.msra.mxu0 0
          %2163 = vmatprep.subr.bf16.mxu0 0
          %2164 = vmatpush1.bf16.msra.mxu0 0
          %2165 = vmatprep.mubr.bf16.mxu0 0
          %2166 = vmatmul.mubr.bf16.gmra.mrb[0].mxu0 %v596
          %v2167 = vpop.f32.mrb[0].mxu0
          %v2168 = vadd.f32 0.0, %v2167
          %v2169 = vpop.f32.mrb[0].mxu0
          %v2170 = vadd.f32 0.0, %v2169
          %v2171 = vpop.f32.mrb[0].mxu0
          %v2172 = vpop.f32.mrb[0].mxu0
          %2173 = vdwg.mxu0
          %2174 = vmatprep.subr.bf16.mxu0 %v1624
          %2175 = vmatpush1.bf16.msra.mxu0 %v1623
          %2176 = vmatprep.subr.bf16.mxu0 %v1656
          %2177 = vmatpush1.bf16.msra.mxu0 %v1655
          %2178 = vmatprep.subr.bf16.mxu0 %v1688
          %2179 = vmatpush1.bf16.msra.mxu0 %v1687
          %2180 = vmatprep.subr.bf16.mxu0 %v1720
          %2181 = vmatpush1.bf16.msra.mxu0 %v1719
          %2182 = vmatprep.subr.bf16.mxu0 %v1752
          %2183 = vmatpush1.bf16.msra.mxu0 %v1751
          %2184 = vmatprep.subr.bf16.mxu0 %v1784
          %2185 = vmatpush1.bf16.msra.mxu0 %v1783
          %2186 = vmatprep.subr.bf16.mxu0 %v1816
          %2187 = vmatpush1.bf16.msra.mxu0 %v1815
          %2188 = vmatprep.subr.bf16.mxu0 %v1848
          %2189 = vmatpush1.bf16.msra.mxu0 %v1847
          %2190 = vmatprep.subr.bf16.mxu0 0
          %2191 = vmatpush1.bf16.msra.mxu0 0
          %2192 = vmatprep.subr.bf16.mxu0 0
          %2193 = vmatpush1.bf16.msra.mxu0 0
          %2194 = vmatprep.subr.bf16.mxu0 0
          %2195 = vmatpush1.bf16.msra.mxu0 0
          %2196 = vmatprep.subr.bf16.mxu0 0
          %2197 = vmatpush1.bf16.msra.mxu0 0
          %2198 = vmatprep.subr.bf16.mxu0 0
          %2199 = vmatpush1.bf16.msra.mxu0 0
          %2200 = vmatprep.subr.bf16.mxu0 0
          %2201 = vmatpush1.bf16.msra.mxu0 0
          %2202 = vmatprep.subr.bf16.mxu0 0
          %2203 = vmatpush1.bf16.msra.mxu0 0
          %2204 = vmatprep.subr.bf16.mxu0 0
          %2205 = vmatpush1.bf16.msra.mxu0 0
          %2206 = vmatprep.mubr.bf16.mxu0 0
          %2207 = vmatmul.mubr.bf16.gmra.mrb[0].mxu0 %v596
          %v2208 = vpop.f32.mrb[0].mxu0
          %v2209 = vadd.f32 0.0, %v2208
          %v2210 = vpop.f32.mrb[0].mxu0
          %v2211 = vadd.f32 0.0, %v2210
          %v2212 = vpop.f32.mrb[0].mxu0
          %v2213 = vpop.f32.mrb[0].mxu0
          %2214 = vdwg.mxu0
          %2215 = vmatprep.subr.bf16.mxu0 %v1626
          %2216 = vmatpush1.bf16.msra.mxu0 %v1625
          %2217 = vmatprep.subr.bf16.mxu0 %v1658
          %2218 = vmatpush1.bf16.msra.mxu0 %v1657
          %2219 = vmatprep.subr.bf16.mxu0 %v1690
          %2220 = vmatpush1.bf16.msra.mxu0 %v1689
          %2221 = vmatprep.subr.bf16.mxu0 %v1722
          %2222 = vmatpush1.bf16.msra.mxu0 %v1721
          %2223 = vmatprep.subr.bf16.mxu0 %v1754
          %2224 = vmatpush1.bf16.msra.mxu0 %v1753
          %2225 = vmatprep.subr.bf16.mxu0 %v1786
          %2226 = vmatpush1.bf16.msra.mxu0 %v1785
          %2227 = vmatprep.subr.bf16.mxu0 %v1818
          %2228 = vmatpush1.bf16.msra.mxu0 %v1817
          %2229 = vmatprep.subr.bf16.mxu0 %v1850
          %2230 = vmatpush1.bf16.msra.mxu0 %v1849
          %2231 = vmatprep.subr.bf16.mxu0 0
          %2232 = vmatpush1.bf16.msra.mxu0 0
          %2233 = vmatprep.subr.bf16.mxu0 0
          %2234 = vmatpush1.bf16.msra.mxu0 0
          %2235 = vmatprep.subr.bf16.mxu0 0
          %2236 = vmatpush1.bf16.msra.mxu0 0
          %2237 = vmatprep.subr.bf16.mxu0 0
          %2238 = vmatpush1.bf16.msra.mxu0 0
          %2239 = vmatprep.subr.bf16.mxu0 0
          %2240 = vmatpush1.bf16.msra.mxu0 0
          %2241 = vmatprep.subr.bf16.mxu0 0
          %2242 = vmatpush1.bf16.msra.mxu0 0
          %2243 = vmatprep.subr.bf16.mxu0 0
          %2244 = vmatpush1.bf16.msra.mxu0 0
          %2245 = vmatprep.subr.bf16.mxu0 0
          %2246 = vmatpush1.bf16.msra.mxu0 0
          %2247 = vmatprep.mubr.bf16.mxu0 0
          %2248 = vmatmul.mubr.bf16.gmra.mrb[0].mxu0 %v596
          %v2249 = vpop.f32.mrb[0].mxu0
          %v2250 = vadd.f32 0.0, %v2249
          %v2251 = vpop.f32.mrb[0].mxu0
          %v2252 = vadd.f32 0.0, %v2251
          %v2253 = vpop.f32.mrb[0].mxu0
          %v2254 = vpop.f32.mrb[0].mxu0
          %2255 = vdwg.mxu0
          %2256 = vmatprep.subr.bf16.mxu0 %v1628
          %2257 = vmatpush1.bf16.msra.mxu0 %v1627
          %2258 = vmatprep.subr.bf16.mxu0 %v1660
          %2259 = vmatpush1.bf16.msra.mxu0 %v1659
          %2260 = vmatprep.subr.bf16.mxu0 %v1692
          %2261 = vmatpush1.bf16.msra.mxu0 %v1691
          %2262 = vmatprep.subr.bf16.mxu0 %v1724
          %2263 = vmatpush1.bf16.msra.mxu0 %v1723
          %2264 = vmatprep.subr.bf16.mxu0 %v1756
          %2265 = vmatpush1.bf16.msra.mxu0 %v1755
          %2266 = vmatprep.subr.bf16.mxu0 %v1788
          %2267 = vmatpush1.bf16.msra.mxu0 %v1787
          %2268 = vmatprep.subr.bf16.mxu0 %v1820
          %2269 = vmatpush1.bf16.msra.mxu0 %v1819
          %2270 = vmatprep.subr.bf16.mxu0 %v1852
          %2271 = vmatpush1.bf16.msra.mxu0 %v1851
          %2272 = vmatprep.subr.bf16.mxu0 0
          %2273 = vmatpush1.bf16.msra.mxu0 0
          %2274 = vmatprep.subr.bf16.mxu0 0
          %2275 = vmatpush1.bf16.msra.mxu0 0
          %2276 = vmatprep.subr.bf16.mxu0 0
          %2277 = vmatpush1.bf16.msra.mxu0 0
          %2278 = vmatprep.subr.bf16.mxu0 0
          %2279 = vmatpush1.bf16.msra.mxu0 0
          %2280 = vmatprep.subr.bf16.mxu0 0
          %2281 = vmatpush1.bf16.msra.mxu0 0
          %2282 = vmatprep.subr.bf16.mxu0 0
          %2283 = vmatpush1.bf16.msra.mxu0 0
          %2284 = vmatprep.subr.bf16.mxu0 0
          %2285 = vmatpush1.bf16.msra.mxu0 0
          %2286 = vmatprep.subr.bf16.mxu0 0
          %2287 = vmatpush1.bf16.msra.mxu0 0
          %2288 = vmatprep.mubr.bf16.mxu0 0
          %2289 = vmatmul.mubr.bf16.gmra.mrb[0].mxu0 %v596
          %v2290 = vpop.f32.mrb[0].mxu0
          %v2291 = vadd.f32 0.0, %v2290
          %v2292 = vpop.f32.mrb[0].mxu0
          %v2293 = vadd.f32 0.0, %v2292
          %v2294 = vpop.f32.mrb[0].mxu0
          %v2295 = vpop.f32.mrb[0].mxu0
          %2296 = vdwg.mxu0
          %2297 = vmatprep.subr.bf16.mxu0 %v1630
          %2298 = vmatpush1.bf16.msra.mxu0 %v1629
          %2299 = vmatprep.subr.bf16.mxu0 %v1662
          %2300 = vmatpush1.bf16.msra.mxu0 %v1661
          %2301 = vmatprep.subr.bf16.mxu0 %v1694
          %2302 = vmatpush1.bf16.msra.mxu0 %v1693
          %2303 = vmatprep.subr.bf16.mxu0 %v1726
          %2304 = vmatpush1.bf16.msra.mxu0 %v1725
          %2305 = vmatprep.subr.bf16.mxu0 %v1758
          %2306 = vmatpush1.bf16.msra.mxu0 %v1757
          %2307 = vmatprep.subr.bf16.mxu0 %v1790
          %2308 = vmatpush1.bf16.msra.mxu0 %v1789
          %2309 = vmatprep.subr.bf16.mxu0 %v1822
          %2310 = vmatpush1.bf16.msra.mxu0 %v1821
          %2311 = vmatprep.subr.bf16.mxu0 %v1854
          %2312 = vmatpush1.bf16.msra.mxu0 %v1853
          %2313 = vmatprep.subr.bf16.mxu0 0
          %2314 = vmatpush1.bf16.msra.mxu0 0
          %2315 = vmatprep.subr.bf16.mxu0 0
          %2316 = vmatpush1.bf16.msra.mxu0 0
          %2317 = vmatprep.subr.bf16.mxu0 0
          %2318 = vmatpush1.bf16.msra.mxu0 0
          %2319 = vmatprep.subr.bf16.mxu0 0
          %2320 = vmatpush1.bf16.msra.mxu0 0
          %2321 = vmatprep.subr.bf16.mxu0 0
          %2322 = vmatpush1.bf16.msra.mxu0 0
          %2323 = vmatprep.subr.bf16.mxu0 0
          %2324 = vmatpush1.bf16.msra.mxu0 0
          %2325 = vmatprep.subr.bf16.mxu0 0
          %2326 = vmatpush1.bf16.msra.mxu0 0
          %2327 = vmatprep.subr.bf16.mxu0 0
          %2328 = vmatpush1.bf16.msra.mxu0 0
          %2329 = vmatprep.mubr.bf16.mxu0 0
          %2330 = vmatmul.mubr.bf16.gmra.mrb[0].mxu0 %v596
          %v2331 = vpop.f32.mrb[0].mxu0
          %v2332 = vadd.f32 0.0, %v2331
          %v2333 = vpop.f32.mrb[0].mxu0
          %v2334 = vadd.f32 0.0, %v2333
          %v2335 = vpop.f32.mrb[0].mxu0
          %v2336 = vpop.f32.mrb[0].mxu0
          %2337 = vdwg.mxu0
          %2338 = vmatprep.subr.bf16.mxu0 %v1632
          %2339 = vmatpush1.bf16.msra.mxu0 %v1631
          %2340 = vmatprep.subr.bf16.mxu0 %v1664
          %2341 = vmatpush1.bf16.msra.mxu0 %v1663
          %2342 = vmatprep.subr.bf16.mxu0 %v1696
          %2343 = vmatpush1.bf16.msra.mxu0 %v1695
          %2344 = vmatprep.subr.bf16.mxu0 %v1728
          %2345 = vmatpush1.bf16.msra.mxu0 %v1727
          %2346 = vmatprep.subr.bf16.mxu0 %v1760
          %2347 = vmatpush1.bf16.msra.mxu0 %v1759
          %2348 = vmatprep.subr.bf16.mxu0 %v1792
          %2349 = vmatpush1.bf16.msra.mxu0 %v1791
          %2350 = vmatprep.subr.bf16.mxu0 %v1824
          %2351 = vmatpush1.bf16.msra.mxu0 %v1823
          %2352 = vmatprep.subr.bf16.mxu0 %v1856
          %2353 = vmatpush1.bf16.msra.mxu0 %v1855
          %2354 = vmatprep.subr.bf16.mxu0 0
          %2355 = vmatpush1.bf16.msra.mxu0 0
          %2356 = vmatprep.subr.bf16.mxu0 0
          %2357 = vmatpush1.bf16.msra.mxu0 0
          %2358 = vmatprep.subr.bf16.mxu0 0
          %2359 = vmatpush1.bf16.msra.mxu0 0
          %2360 = vmatprep.subr.bf16.mxu0 0
          %2361 = vmatpush1.bf16.msra.mxu0 0
          %2362 = vmatprep.subr.bf16.mxu0 0
          %2363 = vmatpush1.bf16.msra.mxu0 0
          %2364 = vmatprep.subr.bf16.mxu0 0
          %2365 = vmatpush1.bf16.msra.mxu0 0
          %2366 = vmatprep.subr.bf16.mxu0 0
          %2367 = vmatpush1.bf16.msra.mxu0 0
          %2368 = vmatprep.subr.bf16.mxu0 0
          %2369 = vmatpush1.bf16.msra.mxu0 0
          %2370 = vmatprep.mubr.bf16.mxu0 0
          %2371 = vmatmul.mubr.bf16.gmra.mrb[0].mxu0 %v596
          %v2372 = vpop.f32.mrb[0].mxu0
          %v2373 = vadd.f32 0.0, %v2372
          %v2374 = vpop.f32.mrb[0].mxu0
          %v2375 = vadd.f32 0.0, %v2374
          %v2376 = vpop.f32.mrb[0].mxu0
          %v2377 = vpop.f32.mrb[0].mxu0
          %2378 = vdwg.mxu0
          %2379 = vmatprep.subr.bf16.mxu0 %v1634
          %2380 = vmatpush1.bf16.msra.mxu0 %v1633
          %2381 = vmatprep.subr.bf16.mxu0 %v1666
          %2382 = vmatpush1.bf16.msra.mxu0 %v1665
          %2383 = vmatprep.subr.bf16.mxu0 %v1698
          %2384 = vmatpush1.bf16.msra.mxu0 %v1697
          %2385 = vmatprep.subr.bf16.mxu0 %v1730
          %2386 = vmatpush1.bf16.msra.mxu0 %v1729
          %2387 = vmatprep.subr.bf16.mxu0 %v1762
          %2388 = vmatpush1.bf16.msra.mxu0 %v1761
          %2389 = vmatprep.subr.bf16.mxu0 %v1794
          %2390 = vmatpush1.bf16.msra.mxu0 %v1793
          %2391 = vmatprep.subr.bf16.mxu0 %v1826
          %2392 = vmatpush1.bf16.msra.mxu0 %v1825
          %2393 = vmatprep.subr.bf16.mxu0 %v1858
          %2394 = vmatpush1.bf16.msra.mxu0 %v1857
          %2395 = vmatprep.subr.bf16.mxu0 0
          %2396 = vmatpush1.bf16.msra.mxu0 0
          %2397 = vmatprep.subr.bf16.mxu0 0
          %2398 = vmatpush1.bf16.msra.mxu0 0
          %2399 = vmatprep.subr.bf16.mxu0 0
          %2400 = vmatpush1.bf16.msra.mxu0 0
          %2401 = vmatprep.subr.bf16.mxu0 0
          %2402 = vmatpush1.bf16.msra.mxu0 0
          %2403 = vmatprep.subr.bf16.mxu0 0
          %2404 = vmatpush1.bf16.msra.mxu0 0
          %2405 = vmatprep.subr.bf16.mxu0 0
          %2406 = vmatpush1.bf16.msra.mxu0 0
          %2407 = vmatprep.subr.bf16.mxu0 0
          %2408 = vmatpush1.bf16.msra.mxu0 0
          %2409 = vmatprep.subr.bf16.mxu0 0
          %2410 = vmatpush1.bf16.msra.mxu0 0
          %2411 = vmatprep.mubr.bf16.mxu0 0
          %2412 = vmatmul.mubr.bf16.gmra.mrb[0].mxu0 %v596
          %v2413 = vpop.f32.mrb[0].mxu0
          %v2414 = vadd.f32 0.0, %v2413
          %v2415 = vpop.f32.mrb[0].mxu0
          %v2416 = vadd.f32 0.0, %v2415
          %v2417 = vpop.f32.mrb[0].mxu0
          %v2418 = vpop.f32.mrb[0].mxu0
          %2419 = vdwg.mxu0
          %2420 = vmatprep.subr.bf16.mxu0 %v1636
          %2421 = vmatpush1.bf16.msra.mxu0 %v1635
          %2422 = vmatprep.subr.bf16.mxu0 %v1668
          %2423 = vmatpush1.bf16.msra.mxu0 %v1667
          %2424 = vmatprep.subr.bf16.mxu0 %v1700
          %2425 = vmatpush1.bf16.msra.mxu0 %v1699
          %2426 = vmatprep.subr.bf16.mxu0 %v1732
          %2427 = vmatpush1.bf16.msra.mxu0 %v1731
          %2428 = vmatprep.subr.bf16.mxu0 %v1764
          %2429 = vmatpush1.bf16.msra.mxu0 %v1763
          %2430 = vmatprep.subr.bf16.mxu0 %v1796
          %2431 = vmatpush1.bf16.msra.mxu0 %v1795
          %2432 = vmatprep.subr.bf16.mxu0 %v1828
          %2433 = vmatpush1.bf16.msra.mxu0 %v1827
          %2434 = vmatprep.subr.bf16.mxu0 %v1860
          %2435 = vmatpush1.bf16.msra.mxu0 %v1859
          %2436 = vmatprep.subr.bf16.mxu0 0
          %2437 = vmatpush1.bf16.msra.mxu0 0
          %2438 = vmatprep.subr.bf16.mxu0 0
          %2439 = vmatpush1.bf16.msra.mxu0 0
          %2440 = vmatprep.subr.bf16.mxu0 0
          %2441 = vmatpush1.bf16.msra.mxu0 0
          %2442 = vmatprep.subr.bf16.mxu0 0
          %2443 = vmatpush1.bf16.msra.mxu0 0
          %2444 = vmatprep.subr.bf16.mxu0 0
          %2445 = vmatpush1.bf16.msra.mxu0 0
          %2446 = vmatprep.subr.bf16.mxu0 0
          %2447 = vmatpush1.bf16.msra.mxu0 0
          %2448 = vmatprep.subr.bf16.mxu0 0
          %2449 = vmatpush1.bf16.msra.mxu0 0
          %2450 = vmatprep.subr.bf16.mxu0 0
          %2451 = vmatpush1.bf16.msra.mxu0 0
          %2452 = vmatprep.mubr.bf16.mxu0 0
          %2453 = vmatmul.mubr.bf16.gmra.mrb[0].mxu0 %v596
          %v2454 = vpop.f32.mrb[0].mxu0
          %v2455 = vadd.f32 0.0, %v2454
          %v2456 = vpop.f32.mrb[0].mxu0
          %v2457 = vadd.f32 0.0, %v2456
          %v2458 = vpop.f32.mrb[0].mxu0
          %v2459 = vpop.f32.mrb[0].mxu0
          %2460 = vdwg.mxu0
          %2461 = vmatprep.subr.bf16.mxu0 %v1638
          %2462 = vmatpush1.bf16.msra.mxu0 %v1637
          %2463 = vmatprep.subr.bf16.mxu0 %v1670
          %2464 = vmatpush1.bf16.msra.mxu0 %v1669
          %2465 = vmatprep.subr.bf16.mxu0 %v1702
          %2466 = vmatpush1.bf16.msra.mxu0 %v1701
          %2467 = vmatprep.subr.bf16.mxu0 %v1734
          %2468 = vmatpush1.bf16.msra.mxu0 %v1733
          %2469 = vmatprep.subr.bf16.mxu0 %v1766
          %2470 = vmatpush1.bf16.msra.mxu0 %v1765
          %2471 = vmatprep.subr.bf16.mxu0 %v1798
          %2472 = vmatpush1.bf16.msra.mxu0 %v1797
          %2473 = vmatprep.subr.bf16.mxu0 %v1830
          %2474 = vmatpush1.bf16.msra.mxu0 %v1829
          %2475 = vmatprep.subr.bf16.mxu0 %v1862
          %2476 = vmatpush1.bf16.msra.mxu0 %v1861
          %2477 = vmatprep.subr.bf16.mxu0 0
          %2478 = vmatpush1.bf16.msra.mxu0 0
          %2479 = vmatprep.subr.bf16.mxu0 0
          %2480 = vmatpush1.bf16.msra.mxu0 0
          %2481 = vmatprep.subr.bf16.mxu0 0
          %2482 = vmatpush1.bf16.msra.mxu0 0
          %2483 = vmatprep.subr.bf16.mxu0 0
          %2484 = vmatpush1.bf16.msra.mxu0 0
          %2485 = vmatprep.subr.bf16.mxu0 0
          %2486 = vmatpush1.bf16.msra.mxu0 0
          %2487 = vmatprep.subr.bf16.mxu0 0
          %2488 = vmatpush1.bf16.msra.mxu0 0
          %2489 = vmatprep.subr.bf16.mxu0 0
          %2490 = vmatpush1.bf16.msra.mxu0 0
          %2491 = vmatprep.subr.bf16.mxu0 0
          %2492 = vmatpush1.bf16.msra.mxu0 0
          %2493 = vmatprep.mubr.bf16.mxu0 0
          %2494 = vmatmul.mubr.bf16.gmra.mrb[0].mxu0 %v596
          %v2495 = vpop.f32.mrb[0].mxu0
          %v2496 = vadd.f32 0.0, %v2495
          %v2497 = vpop.f32.mrb[0].mxu0
          %v2498 = vadd.f32 0.0, %v2497
          %v2499 = vpop.f32.mrb[0].mxu0
          %v2500 = vpop.f32.mrb[0].mxu0
          %2501 = vdwg.mxu0
          %2502 = vmatprep.subr.bf16.mxu0 %v1640
          %2503 = vmatpush1.bf16.msra.mxu0 %v1639
          %2504 = vmatprep.subr.bf16.mxu0 %v1672
          %2505 = vmatpush1.bf16.msra.mxu0 %v1671
          %2506 = vmatprep.subr.bf16.mxu0 %v1704
          %2507 = vmatpush1.bf16.msra.mxu0 %v1703
          %2508 = vmatprep.subr.bf16.mxu0 %v1736
          %2509 = vmatpush1.bf16.msra.mxu0 %v1735
          %2510 = vmatprep.subr.bf16.mxu0 %v1768
          %2511 = vmatpush1.bf16.msra.mxu0 %v1767
          %2512 = vmatprep.subr.bf16.mxu0 %v1800
          %2513 = vmatpush1.bf16.msra.mxu0 %v1799
          %2514 = vmatprep.subr.bf16.mxu0 %v1832
          %2515 = vmatpush1.bf16.msra.mxu0 %v1831
          %2516 = vmatprep.subr.bf16.mxu0 %v1864
          %2517 = vmatpush1.bf16.msra.mxu0 %v1863
          %2518 = vmatprep.subr.bf16.mxu0 0
          %2519 = vmatpush1.bf16.msra.mxu0 0
          %2520 = vmatprep.subr.bf16.mxu0 0
          %2521 = vmatpush1.bf16.msra.mxu0 0
          %2522 = vmatprep.subr.bf16.mxu0 0
          %2523 = vmatpush1.bf16.msra.mxu0 0
          %2524 = vmatprep.subr.bf16.mxu0 0
          %2525 = vmatpush1.bf16.msra.mxu0 0
          %2526 = vmatprep.subr.bf16.mxu0 0
          %2527 = vmatpush1.bf16.msra.mxu0 0
          %2528 = vmatprep.subr.bf16.mxu0 0
          %2529 = vmatpush1.bf16.msra.mxu0 0
          %2530 = vmatprep.subr.bf16.mxu0 0
          %2531 = vmatpush1.bf16.msra.mxu0 0
          %2532 = vmatprep.subr.bf16.mxu0 0
          %2533 = vmatpush1.bf16.msra.mxu0 0
          %2534 = vmatprep.mubr.bf16.mxu0 0
          %2535 = vmatmul.mubr.bf16.gmra.mrb[0].mxu0 %v596
          %v2536 = vpop.f32.mrb[0].mxu0
          %v2537 = vadd.f32 0.0, %v2536
          %v2538 = vpop.f32.mrb[0].mxu0
          %v2539 = vadd.f32 0.0, %v2538
          %v2540 = vpop.f32.mrb[0].mxu0
          %v2541 = vpop.f32.mrb[0].mxu0
          %2542 = vdwg.mxu0
          %2543 = vmatprep.subr.bf16.mxu0 %v1642
          %2544 = vmatpush1.bf16.msra.mxu0 %v1641
          %2545 = vmatprep.subr.bf16.mxu0 %v1674
          %2546 = vmatpush1.bf16.msra.mxu0 %v1673
          %2547 = vmatprep.subr.bf16.mxu0 %v1706
          %2548 = vmatpush1.bf16.msra.mxu0 %v1705
          %2549 = vmatprep.subr.bf16.mxu0 %v1738
          %2550 = vmatpush1.bf16.msra.mxu0 %v1737
          %2551 = vmatprep.subr.bf16.mxu0 %v1770
          %2552 = vmatpush1.bf16.msra.mxu0 %v1769
          %2553 = vmatprep.subr.bf16.mxu0 %v1802
          %2554 = vmatpush1.bf16.msra.mxu0 %v1801
          %2555 = vmatprep.subr.bf16.mxu0 %v1834
          %2556 = vmatpush1.bf16.msra.mxu0 %v1833
          %2557 = vmatprep.subr.bf16.mxu0 %v1866
          %2558 = vmatpush1.bf16.msra.mxu0 %v1865
          %2559 = vmatprep.subr.bf16.mxu0 0
          %2560 = vmatpush1.bf16.msra.mxu0 0
          %2561 = vmatprep.subr.bf16.mxu0 0
          %2562 = vmatpush1.bf16.msra.mxu0 0
          %2563 = vmatprep.subr.bf16.mxu0 0
          %2564 = vmatpush1.bf16.msra.mxu0 0
          %2565 = vmatprep.subr.bf16.mxu0 0
          %2566 = vmatpush1.bf16.msra.mxu0 0
          %2567 = vmatprep.subr.bf16.mxu0 0
          %2568 = vmatpush1.bf16.msra.mxu0 0
          %2569 = vmatprep.subr.bf16.mxu0 0
          %2570 = vmatpush1.bf16.msra.mxu0 0
          %2571 = vmatprep.subr.bf16.mxu0 0
          %2572 = vmatpush1.bf16.msra.mxu0 0
          %2573 = vmatprep.subr.bf16.mxu0 0
          %2574 = vmatpush1.bf16.msra.mxu0 0
          %2575 = vmatprep.mubr.bf16.mxu0 0
          %2576 = vmatmul.mubr.bf16.gmra.mrb[0].mxu0 %v596
          %v2577 = vpop.f32.mrb[0].mxu0
          %v2578 = vadd.f32 0.0, %v2577
          %v2579 = vpop.f32.mrb[0].mxu0
          %v2580 = vadd.f32 0.0, %v2579
          %v2581 = vpop.f32.mrb[0].mxu0
          %v2582 = vpop.f32.mrb[0].mxu0
          %2583 = vdwg.mxu0
          %2584 = vmatprep.subr.bf16.mxu0 %v1644
          %2585 = vmatpush1.bf16.msra.mxu0 %v1643
          %2586 = vmatprep.subr.bf16.mxu0 %v1676
          %2587 = vmatpush1.bf16.msra.mxu0 %v1675
          %2588 = vmatprep.subr.bf16.mxu0 %v1708
          %2589 = vmatpush1.bf16.msra.mxu0 %v1707
          %2590 = vmatprep.subr.bf16.mxu0 %v1740
          %2591 = vmatpush1.bf16.msra.mxu0 %v1739
          %2592 = vmatprep.subr.bf16.mxu0 %v1772
          %2593 = vmatpush1.bf16.msra.mxu0 %v1771
          %2594 = vmatprep.subr.bf16.mxu0 %v1804
          %2595 = vmatpush1.bf16.msra.mxu0 %v1803
          %2596 = vmatprep.subr.bf16.mxu0 %v1836
          %2597 = vmatpush1.bf16.msra.mxu0 %v1835
          %2598 = vmatprep.subr.bf16.mxu0 %v1868
          %2599 = vmatpush1.bf16.msra.mxu0 %v1867
          %2600 = vmatprep.subr.bf16.mxu0 0
          %2601 = vmatpush1.bf16.msra.mxu0 0
          %2602 = vmatprep.subr.bf16.mxu0 0
          %2603 = vmatpush1.bf16.msra.mxu0 0
          %2604 = vmatprep.subr.bf16.mxu0 0
          %2605 = vmatpush1.bf16.msra.mxu0 0
          %2606 = vmatprep.subr.bf16.mxu0 0
          %2607 = vmatpush1.bf16.msra.mxu0 0
          %2608 = vmatprep.subr.bf16.mxu0 0
          %2609 = vmatpush1.bf16.msra.mxu0 0
          %2610 = vmatprep.subr.bf16.mxu0 0
          %2611 = vmatpush1.bf16.msra.mxu0 0
          %2612 = vmatprep.subr.bf16.mxu0 0
          %2613 = vmatpush1.bf16.msra.mxu0 0
          %2614 = vmatprep.subr.bf16.mxu0 0
          %2615 = vmatpush1.bf16.msra.mxu0 0
          %2616 = vmatprep.mubr.bf16.mxu0 0
          %2617 = vmatmul.mubr.bf16.gmra.mrb[0].mxu0 %v596
          %v2618 = vpop.f32.mrb[0].mxu0
          %v2619 = vadd.f32 0.0, %v2618
          %v2620 = vpop.f32.mrb[0].mxu0
          %v2621 = vadd.f32 0.0, %v2620
          %v2622 = vpop.f32.mrb[0].mxu0
          %v2623 = vpop.f32.mrb[0].mxu0
          %2624 = vdwg.mxu0
          %2625 = vmatprep.subr.bf16.mxu0 %v1646
          %2626 = vmatpush1.bf16.msra.mxu0 %v1645
          %2627 = vmatprep.subr.bf16.mxu0 %v1678
          %2628 = vmatpush1.bf16.msra.mxu0 %v1677
          %2629 = vmatprep.subr.bf16.mxu0 %v1710
          %2630 = vmatpush1.bf16.msra.mxu0 %v1709
          %2631 = vmatprep.subr.bf16.mxu0 %v1742
          %2632 = vmatpush1.bf16.msra.mxu0 %v1741
          %2633 = vmatprep.subr.bf16.mxu0 %v1774
          %2634 = vmatpush1.bf16.msra.mxu0 %v1773
          %2635 = vmatprep.subr.bf16.mxu0 %v1806
          %2636 = vmatpush1.bf16.msra.mxu0 %v1805
          %2637 = vmatprep.subr.bf16.mxu0 %v1838
          %2638 = vmatpush1.bf16.msra.mxu0 %v1837
          %2639 = vmatprep.subr.bf16.mxu0 %v1870
          %2640 = vmatpush1.bf16.msra.mxu0 %v1869
          %2641 = vmatprep.subr.bf16.mxu0 0
          %2642 = vmatpush1.bf16.msra.mxu0 0
          %2643 = vmatprep.subr.bf16.mxu0 0
          %2644 = vmatpush1.bf16.msra.mxu0 0
          %2645 = vmatprep.subr.bf16.mxu0 0
          %2646 = vmatpush1.bf16.msra.mxu0 0
          %2647 = vmatprep.subr.bf16.mxu0 0
          %2648 = vmatpush1.bf16.msra.mxu0 0
          %2649 = vmatprep.subr.bf16.mxu0 0
          %2650 = vmatpush1.bf16.msra.mxu0 0
          %2651 = vmatprep.subr.bf16.mxu0 0
          %2652 = vmatpush1.bf16.msra.mxu0 0
          %2653 = vmatprep.subr.bf16.mxu0 0
          %2654 = vmatpush1.bf16.msra.mxu0 0
          %2655 = vmatprep.subr.bf16.mxu0 0
          %2656 = vmatpush1.bf16.msra.mxu0 0
          %2657 = vmatprep.mubr.bf16.mxu0 0
          %2658 = vmatmul.mubr.bf16.gmra.mrb[0].mxu0 %v596
          %v2659 = vpop.f32.mrb[0].mxu0
          %v2660 = vadd.f32 0.0, %v2659
          %v2661 = vpop.f32.mrb[0].mxu0
          %v2662 = vadd.f32 0.0, %v2661
          %v2663 = vpop.f32.mrb[0].mxu0
          %v2664 = vpop.f32.mrb[0].mxu0
          %2665 = vdwg.mxu0
          %2666 = vmatprep.subr.bf16.mxu0 %v1648
          %2667 = vmatpush1.bf16.msra.mxu0 %v1647
          %2668 = vmatprep.subr.bf16.mxu0 %v1680
          %2669 = vmatpush1.bf16.msra.mxu0 %v1679
          %2670 = vmatprep.subr.bf16.mxu0 %v1712
          %2671 = vmatpush1.bf16.msra.mxu0 %v1711
          %2672 = vmatprep.subr.bf16.mxu0 %v1744
          %2673 = vmatpush1.bf16.msra.mxu0 %v1743
          %2674 = vmatprep.subr.bf16.mxu0 %v1776
          %2675 = vmatpush1.bf16.msra.mxu0 %v1775
          %2676 = vmatprep.subr.bf16.mxu0 %v1808
          %2677 = vmatpush1.bf16.msra.mxu0 %v1807
          %2678 = vmatprep.subr.bf16.mxu0 %v1840
          %2679 = vmatpush1.bf16.msra.mxu0 %v1839
          %2680 = vmatprep.subr.bf16.mxu0 %v1872
          %2681 = vmatpush1.bf16.msra.mxu0 %v1871
          %2682 = vmatprep.subr.bf16.mxu0 0
          %2683 = vmatpush1.bf16.msra.mxu0 0
          %2684 = vmatprep.subr.bf16.mxu0 0
          %2685 = vmatpush1.bf16.msra.mxu0 0
          %2686 = vmatprep.subr.bf16.mxu0 0
          %2687 = vmatpush1.bf16.msra.mxu0 0
          %2688 = vmatprep.subr.bf16.mxu0 0
          %2689 = vmatpush1.bf16.msra.mxu0 0
          %2690 = vmatprep.subr.bf16.mxu0 0
          %2691 = vmatpush1.bf16.msra.mxu0 0
          %2692 = vmatprep.subr.bf16.mxu0 0
          %2693 = vmatpush1.bf16.msra.mxu0 0
          %2694 = vmatprep.subr.bf16.mxu0 0
          %2695 = vmatpush1.bf16.msra.mxu0 0
          %2696 = vmatprep.subr.bf16.mxu0 0
          %2697 = vmatpush1.bf16.msra.mxu0 0
          %2698 = vmatprep.mubr.bf16.mxu0 0
          %2699 = vmatmul.mubr.bf16.gmra.mrb[0].mxu0 %v596
          %v2700 = vpop.f32.mrb[0].mxu0
          %v2701 = vadd.f32 0.0, %v2700
          %v2702 = vpop.f32.mrb[0].mxu0
          %v2703 = vadd.f32 0.0, %v2702
          %v2704 = vpop.f32.mrb[0].mxu0
          %v2705 = vpop.f32.mrb[0].mxu0
          %2706 = vdwg.mxu0
          %2707 = vmatprep.subr.bf16.mxu0 %v1650
          %2708 = vmatpush1.bf16.msra.mxu0 %v1649
          %2709 = vmatprep.subr.bf16.mxu0 %v1682
          %2710 = vmatpush1.bf16.msra.mxu0 %v1681
          %2711 = vmatprep.subr.bf16.mxu0 %v1714
          %2712 = vmatpush1.bf16.msra.mxu0 %v1713
          %2713 = vmatprep.subr.bf16.mxu0 %v1746
          %2714 = vmatpush1.bf16.msra.mxu0 %v1745
          %2715 = vmatprep.subr.bf16.mxu0 %v1778
          %2716 = vmatpush1.bf16.msra.mxu0 %v1777
          %2717 = vmatprep.subr.bf16.mxu0 %v1810
          %2718 = vmatpush1.bf16.msra.mxu0 %v1809
          %2719 = vmatprep.subr.bf16.mxu0 %v1842
          %2720 = vmatpush1.bf16.msra.mxu0 %v1841
          %2721 = vmatprep.subr.bf16.mxu0 %v1874
          %2722 = vmatpush1.bf16.msra.mxu0 %v1873
          %2723 = vmatprep.subr.bf16.mxu0 0
          %2724 = vmatpush1.bf16.msra.mxu0 0
          %2725 = vmatprep.subr.bf16.mxu0 0
          %2726 = vmatpush1.bf16.msra.mxu0 0
          %2727 = vmatprep.subr.bf16.mxu0 0
          %2728 = vmatpush1.bf16.msra.mxu0 0
          %2729 = vmatprep.subr.bf16.mxu0 0
          %2730 = vmatpush1.bf16.msra.mxu0 0
          %2731 = vmatprep.subr.bf16.mxu0 0
          %2732 = vmatpush1.bf16.msra.mxu0 0
          %2733 = vmatprep.subr.bf16.mxu0 0
          %2734 = vmatpush1.bf16.msra.mxu0 0
          %2735 = vmatprep.subr.bf16.mxu0 0
          %2736 = vmatpush1.bf16.msra.mxu0 0
          %2737 = vmatprep.subr.bf16.mxu0 0
          %2738 = vmatpush1.bf16.msra.mxu0 0
          %2739 = vmatprep.mubr.bf16.mxu0 0
          %2740 = vmatmul.mubr.bf16.gmra.mrb[0].mxu0 %v596
          %v2741 = vpop.f32.mrb[0].mxu0
          %v2742 = vadd.f32 0.0, %v2741
          %v2743 = vpop.f32.mrb[0].mxu0
          %v2744 = vadd.f32 0.0, %v2743
          %v2745 = vpop.f32.mrb[0].mxu0
          %v2746 = vpop.f32.mrb[0].mxu0
          %2747 = vdwg.mxu0
          %2748 = vmatprep.subr.bf16.mxu0 %v1652
          %2749 = vmatpush1.bf16.msra.mxu0 %v1651
          %2750 = vmatprep.subr.bf16.mxu0 %v1684
          %2751 = vmatpush1.bf16.msra.mxu0 %v1683
          %2752 = vmatprep.subr.bf16.mxu0 %v1716
          %2753 = vmatpush1.bf16.msra.mxu0 %v1715
          %2754 = vmatprep.subr.bf16.mxu0 %v1748
          %2755 = vmatpush1.bf16.msra.mxu0 %v1747
          %2756 = vmatprep.subr.bf16.mxu0 %v1780
          %2757 = vmatpush1.bf16.msra.mxu0 %v1779
          %2758 = vmatprep.subr.bf16.mxu0 %v1812
          %2759 = vmatpush1.bf16.msra.mxu0 %v1811
          %2760 = vmatprep.subr.bf16.mxu0 %v1844
          %2761 = vmatpush1.bf16.msra.mxu0 %v1843
          %2762 = vmatprep.subr.bf16.mxu0 %v1876
          %2763 = vmatpush1.bf16.msra.mxu0 %v1875
          %2764 = vmatprep.subr.bf16.mxu0 0
          %2765 = vmatpush1.bf16.msra.mxu0 0
          %2766 = vmatprep.subr.bf16.mxu0 0
          %2767 = vmatpush1.bf16.msra.mxu0 0
          %2768 = vmatprep.subr.bf16.mxu0 0
          %2769 = vmatpush1.bf16.msra.mxu0 0
          %2770 = vmatprep.subr.bf16.mxu0 0
          %2771 = vmatpush1.bf16.msra.mxu0 0
          %2772 = vmatprep.subr.bf16.mxu0 0
          %2773 = vmatpush1.bf16.msra.mxu0 0
          %2774 = vmatprep.subr.bf16.mxu0 0
          %2775 = vmatpush1.bf16.msra.mxu0 0
          %2776 = vmatprep.subr.bf16.mxu0 0
          %2777 = vmatpush1.bf16.msra.mxu0 0
          %2778 = vmatprep.subr.bf16.mxu0 0
          %2779 = vmatpush1.bf16.msra.mxu0 0
          %2780 = vmatprep.mubr.bf16.mxu0 0
          %2781 = vmatmul.mubr.bf16.gmra.mrb[0].mxu0 %v596
          %v2782 = vpop.f32.mrb[0].mxu0
          %v2783 = vadd.f32 0.0, %v2782
          %v2784 = vpop.f32.mrb[0].mxu0
          %v2785 = vadd.f32 0.0, %v2784
          %v2786 = vpop.f32.mrb[0].mxu0
          %v2787 = vpop.f32.mrb[0].mxu0
          %2788 = vdwg.mxu0
          %v2821 = vcombine.low %v2168, %v2170
          %v2822 = vcombine.low %v2209, %v2211
          %v2823 = vcombine.low %v2250, %v2252
          %v2824 = vcombine.low %v2291, %v2293
          %v2826 = vunpack.c.l.s4 1966171168
          %v2827 = vunpack.c.0.s8 %v2826
          %v2828 = vlaneseq
          %v2829 = vshrl.u32 %v2828, 7
          %v2830 = vsub.s32 %v2827, %v2829
          %v2831 = vrot.slane %v2821, %v2830
          %v2833 = vunpack.c.l.s4 1966171168
          %v2834 = vunpack.c.0.s8 %v2833
          %v2835 = vlaneseq
          %v2836 = vshrl.u32 %v2835, 7
          %v2837 = vsub.s32 %v2834, %v2836
          %v2838 = vrot.slane %v2822, %v2837
          %v2840 = vunpack.c.l.s4 1966171168
          %v2841 = vunpack.c.0.s8 %v2840
          %v2842 = vlaneseq
          %v2843 = vshrl.u32 %v2842, 7
          %v2844 = vsub.s32 %v2841, %v2843
          %v2845 = vrot.slane %v2823, %v2844
          %v2847 = vunpack.c.l.s4 1966171168
          %v2848 = vunpack.c.0.s8 %v2847
          %v2849 = vlaneseq
          %v2850 = vshrl.u32 %v2849, 7
          %v2851 = vsub.s32 %v2848, %v2850
          %v2852 = vrot.slane %v2824, %v2851
          %v2853 = vcombine.low %v2831, %v2838
          %v2854 = vcombine.low %v2845, %v2852
          %v2856 = vunpack.c.l.s4 1966171168
          %v2857 = vunpack.c.0.s8 %v2856
          %v2858 = vlaneseq
          %v2859 = vshrl.u32 %v2858, 7
          %v2860 = vsub.s32 %v2857, %v2859
          %v2861 = vrot.slane %v2853, %v2860
          %v2863 = vunpack.c.l.s4 1966171168
          %v2864 = vunpack.c.0.s8 %v2863
          %v2865 = vlaneseq
          %v2866 = vshrl.u32 %v2865, 7
          %v2867 = vsub.s32 %v2864, %v2866
          %v2868 = vrot.slane %v2854, %v2867
          %v2869 = vcombine.low %v2861, %v2868
          %v2870 = vcombine.low %v2332, %v2334
          %v2871 = vcombine.low %v2373, %v2375
          %v2872 = vcombine.low %v2414, %v2416
          %v2873 = vcombine.low %v2455, %v2457
          %v2875 = vunpack.c.l.s4 1966171168
          %v2876 = vunpack.c.0.s8 %v2875
          %v2877 = vlaneseq
          %v2878 = vshrl.u32 %v2877, 7
          %v2879 = vsub.s32 %v2876, %v2878
          %v2880 = vrot.slane %v2870, %v2879
          %v2882 = vunpack.c.l.s4 1966171168
          %v2883 = vunpack.c.0.s8 %v2882
          %v2884 = vlaneseq
          %v2885 = vshrl.u32 %v2884, 7
          %v2886 = vsub.s32 %v2883, %v2885
          %v2887 = vrot.slane %v2871, %v2886
          %v2889 = vunpack.c.l.s4 1966171168
          %v2890 = vunpack.c.0.s8 %v2889
          %v2891 = vlaneseq
          %v2892 = vshrl.u32 %v2891, 7
          %v2893 = vsub.s32 %v2890, %v2892
          %v2894 = vrot.slane %v2872, %v2893
          %v2896 = vunpack.c.l.s4 1966171168
          %v2897 = vunpack.c.0.s8 %v2896
          %v2898 = vlaneseq
          %v2899 = vshrl.u32 %v2898, 7
          %v2900 = vsub.s32 %v2897, %v2899
          %v2901 = vrot.slane %v2873, %v2900
          %v2902 = vcombine.low %v2880, %v2887
          %v2903 = vcombine.low %v2894, %v2901
          %v2905 = vunpack.c.l.s4 1966171168
          %v2906 = vunpack.c.0.s8 %v2905
          %v2907 = vlaneseq
          %v2908 = vshrl.u32 %v2907, 7
          %v2909 = vsub.s32 %v2906, %v2908
          %v2910 = vrot.slane %v2902, %v2909
          %v2912 = vunpack.c.l.s4 1966171168
          %v2913 = vunpack.c.0.s8 %v2912
          %v2914 = vlaneseq
          %v2915 = vshrl.u32 %v2914, 7
          %v2916 = vsub.s32 %v2913, %v2915
          %v2917 = vrot.slane %v2903, %v2916
          %v2918 = vcombine.low %v2910, %v2917
          %v2919 = vcombine.low %v2496, %v2498
          %v2920 = vcombine.low %v2537, %v2539
          %v2921 = vcombine.low %v2578, %v2580
          %v2922 = vcombine.low %v2619, %v2621
          %v2924 = vunpack.c.l.s4 1966171168
          %v2925 = vunpack.c.0.s8 %v2924
          %v2926 = vlaneseq
          %v2927 = vshrl.u32 %v2926, 7
          %v2928 = vsub.s32 %v2925, %v2927
          %v2929 = vrot.slane %v2919, %v2928
          %v2931 = vunpack.c.l.s4 1966171168
          %v2932 = vunpack.c.0.s8 %v2931
          %v2933 = vlaneseq
          %v2934 = vshrl.u32 %v2933, 7
          %v2935 = vsub.s32 %v2932, %v2934
          %v2936 = vrot.slane %v2920, %v2935
          %v2938 = vunpack.c.l.s4 1966171168
          %v2939 = vunpack.c.0.s8 %v2938
          %v2940 = vlaneseq
          %v2941 = vshrl.u32 %v2940, 7
          %v2942 = vsub.s32 %v2939, %v2941
          %v2943 = vrot.slane %v2921, %v2942
          %v2945 = vunpack.c.l.s4 1966171168
          %v2946 = vunpack.c.0.s8 %v2945
          %v2947 = vlaneseq
          %v2948 = vshrl.u32 %v2947, 7
          %v2949 = vsub.s32 %v2946, %v2948
          %v2950 = vrot.slane %v2922, %v2949
          %v2951 = vcombine.low %v2929, %v2936
          %v2952 = vcombine.low %v2943, %v2950
          %v2954 = vunpack.c.l.s4 1966171168
          %v2955 = vunpack.c.0.s8 %v2954
          %v2956 = vlaneseq
          %v2957 = vshrl.u32 %v2956, 7
          %v2958 = vsub.s32 %v2955, %v2957
          %v2959 = vrot.slane %v2951, %v2958
          %v2961 = vunpack.c.l.s4 1966171168
          %v2962 = vunpack.c.0.s8 %v2961
          %v2963 = vlaneseq
          %v2964 = vshrl.u32 %v2963, 7
          %v2965 = vsub.s32 %v2962, %v2964
          %v2966 = vrot.slane %v2952, %v2965
          %v2967 = vcombine.low %v2959, %v2966
          %v2968 = vcombine.low %v2660, %v2662
          %v2969 = vcombine.low %v2701, %v2703
          %v2970 = vcombine.low %v2742, %v2744
          %v2971 = vcombine.low %v2783, %v2785
          %v2973 = vunpack.c.l.s4 1966171168
          %v2974 = vunpack.c.0.s8 %v2973
          %v2975 = vlaneseq
          %v2976 = vshrl.u32 %v2975, 7
          %v2977 = vsub.s32 %v2974, %v2976
          %v2978 = vrot.slane %v2968, %v2977
          %v2980 = vunpack.c.l.s4 1966171168
          %v2981 = vunpack.c.0.s8 %v2980
          %v2982 = vlaneseq
          %v2983 = vshrl.u32 %v2982, 7
          %v2984 = vsub.s32 %v2981, %v2983
          %v2985 = vrot.slane %v2969, %v2984
          %v2987 = vunpack.c.l.s4 1966171168
          %v2988 = vunpack.c.0.s8 %v2987
          %v2989 = vlaneseq
          %v2990 = vshrl.u32 %v2989, 7
          %v2991 = vsub.s32 %v2988, %v2990
          %v2992 = vrot.slane %v2970, %v2991
          %v2994 = vunpack.c.l.s4 1966171168
          %v2995 = vunpack.c.0.s8 %v2994
          %v2996 = vlaneseq
          %v2997 = vshrl.u32 %v2996, 7
          %v2998 = vsub.s32 %v2995, %v2997
          %v2999 = vrot.slane %v2971, %v2998
          %v3000 = vcombine.low %v2978, %v2985
          %v3001 = vcombine.low %v2992, %v2999
          %v3003 = vunpack.c.l.s4 1966171168
          %v3004 = vunpack.c.0.s8 %v3003
          %v3005 = vlaneseq
          %v3006 = vshrl.u32 %v3005, 7
          %v3007 = vsub.s32 %v3004, %v3006
          %v3008 = vrot.slane %v3000, %v3007
          %v3010 = vunpack.c.l.s4 1966171168
          %v3011 = vunpack.c.0.s8 %v3010
          %v3012 = vlaneseq
          %v3013 = vshrl.u32 %v3012, 7
          %v3014 = vsub.s32 %v3011, %v3013
          %v3015 = vrot.slane %v3001, %v3014
          %v3016 = vcombine.low %v3008, %v3015
          %3021 = vst [vmem:[#allocation6] sm:$0xff] %v2869
          %3022 = vst [vmem:[#allocation6 + $0x8] sm:$0xff] %v2918
          %3023 = vst [vmem:[#allocation6 + $0x10] sm:$0xff] %v2967
          %3024 = vst [vmem:[#allocation6 + $0x18] sm:$0xff] %v3016
        $region44: #{tpu_custom_call.1} parent=31 // pred_fallthru
          _
        // Predicated region
        $region45: #{tpu_custom_call.1} parent=31 // pred_check
          %p3025 = pneg %p97
        $region46: #{tpu_custom_call.1} parent=31 // pred_check_branch
          %3027 = sbr.rel (%p3025) target = $region48
        $region47: #{tpu_custom_call.1} parent=31 // pred_region
          %s3029 = ssub.s32 512, 512
          %3030 = vsyncadd [#allocation5], %s3029
          %s3032 = sshll.u32 [#allocation6], 4
          %s3033 = int_to_ptr.vmem [resolvable:$true] %s3032
          %3035 = dma.vmem_to_hbm [thread:$0]  %s3033, 512, %s3, [#allocation5]
        $region48: #{tpu_custom_call.1} parent=31 // pred_fallthru
          _
        // Predicated region
        $region49: #{tpu_custom_call.1} parent=31 // pred_check
          %p3036 = pneg %p97
        $region50: #{tpu_custom_call.1} parent=31 // pred_check_branch
          %3038 = sbr.rel (%p3036) target = $region52
        $region51: #{tpu_custom_call.1} parent=31 // pred_region
          %3039 = dma.done [#allocation5], 512
        $region52: #{tpu_custom_call.1} parent=31 // pred_fallthru
          _
      $region32: #{tpu_custom_call.1} parent=5 // pred_fallthru
        _
      %p3040 = scmp.le.s32.totalorder 2, %s11
      // Predicated region
      $region53: #{tpu_custom_call.1} parent=5 // pred_check
        %p3041 = pneg %p3040
      $region54: #{tpu_custom_call.1} parent=5 // pred_check_branch
        %3043 = sbr.rel (%p3041) target = $region56
      $region55: #{tpu_custom_call.1} parent=5 // pred_region
        %s3044 = ssub.s32 %s11, 2
      $region56: #{tpu_custom_call.1} parent=5 // pred_fallthru
        _
    $region6: #{tpu_custom_call.1} parent=1 // loop_footer
      %s15 = sadd.s32 1, %s11
    $region7: #{tpu_custom_call.1} parent=1 // loop_footer_branch
      %10 = sbr.rel target = $region3
    $region8: #{tpu_custom_call.1} parent=1 // loop_exit
      _
    %3045 = vsyncpa [#allocation4], 1
    %s3046 = scalar_lea.sflag [#allocation4], 1
    %3047 = vsyncpa %s3046, 1
    %3048 = vsyncpa [#allocation5], 1
    %s3049 = scalar_lea.sflag [#allocation5], 1
    %3050 = vsyncpa %s3049, 1

</llo_original>
